<compile_context>
chip_gen: v5e
topology: v5e:2x2
jax: 0.10.0
libtpu: 0.0.40
codegen_flags: <defaults>
</compile_context>

<pallas_src>
import functools

import jax
import jax.numpy as jnp
from jax.experimental import pallas as pl
from jax.experimental.pallas import tpu as pltpu

NEG_SLOPE = 0.01  # PyTorch nn.LeakyReLU default negative_slope


# ---------------------------------------------------------------------------
# Generation-aware sizing helpers.
# ---------------------------------------------------------------------------
def _device_kind():
    try:
        return jax.devices()[0].device_kind.lower()
    except Exception:
        return ""


def _vmem_profile():
    """Returns (max streamed tile edge, assumed default scoped-VMEM bytes)."""
    kind = _device_kind()
    if not kind or any(g in kind for g in ("v2", "v3", "v4", "v5")):
        # v5e default scoped VMEM ~16 MiB; 1024^2 bf16 tiles already reach
        # ~85-90% of its HBM roofline, so stay conservative (no vmem override).
        return 1024, 16 << 20
    # v6e / v7x (and newer): ~32 MiB default scoped VMEM.  2048^2 bf16 weight
    # tiles are 8 MiB each (16 MiB double-buffered) and amortize the ~0.35us
    # per-grid-step overhead to >90% of HBM roofline.  NOTE: v7x physical VMEM
    # is only 64 MiB, so do NOT go bigger without raising vmem_limit_bytes.
    return 2048, 32 << 20


def _default_fuse_budget():
    kind = _device_kind()
    if not kind or any(g in kind for g in ("v2", "v3", "v4", "v5")):
        return 8 << 20
    if "v6" in kind:
        return 24 << 20
    return 16 << 20  # v7x and newer


def _pick_tile(dim, target):
    """Largest 128-aligned divisor of dim <= target; dim itself if dim <= target."""
    if dim <= target:
        return dim
    t = (target // 128) * 128
    while t >= 128:
        if dim % t == 0:
            return t
        t -= 128
    return dim  # no lane-aligned divisor; fall back to the full (untiled) dim


def _pick_m_tile(m, target=256):
    """Largest sublane-aligned (x8) divisor of m <= target; m itself if small."""
    if m <= target:
        return m
    t = (target // 8) * 8
    while t >= 8:
        if m % t == 0:
            return t
        t -= 8
    return m


def _stream_vmem_bytes(tm, tn, tk, weight_bufs, needs_acc, out_itemsize):
    weight = weight_bufs * tk * tn * 2      # bf16 weight tiles
    x_tile = 2 * tm * tk * 2                # bf16 activation tiles (double-buffered)
    bias = 2 * tn * 4                       # f32 bias tile (double-buffered)
    acc = tm * tn * 4 if needs_acc else 0   # f32 accumulator scratch
    out = 2 * tm * tn * out_itemsize        # output tiles (double-buffered)
    return weight + x_tile + bias + acc + out


def _vmem_whole_array_spec():
    ms = getattr(pltpu, "MemorySpace", None)
    if ms is not None:
        return pl.BlockSpec(memory_space=ms.VMEM)
    return pl.BlockSpec()  # default placement (VMEM on TPU)


def _weight_spec(block_shape, index_map, bufs):
    """Weight BlockSpec, triple-buffered when the extra buffer fits VMEM."""
    if bufs > 2 and hasattr(pl, "Buffered"):
        try:
            return pl.BlockSpec(block_shape, index_map, pipeline_mode=pl.Buffered(bufs))
        except TypeError:
            pass
    return pl.BlockSpec(block_shape, index_map)


# ---------------------------------------------------------------------------
# Fused kernel: a chain of Linear(+LeakyReLU) layers, everything VMEM-resident.
# No grid -- whole arrays live in VMEM; intermediates never touch HBM.
# ---------------------------------------------------------------------------
def _fused_mlp_kernel(*refs, apply_leaky_flags):
    x_ref, o_ref = refs[0], refs[-1]
    layer_refs = refs[1:-1]  # (w0, b0, w1, b1, ...)
    h = x_ref[...].astype(jnp.float32)
    for i, apply_leaky in enumerate(apply_leaky_flags):
        w = layer_refs[2 * i][...]       # [K, N] bf16 (pre-transposed W.T)
        b = layer_refs[2 * i + 1][...]   # [1, N] f32
        h = jnp.dot(h.astype(w.dtype), w, preferred_element_type=jnp.float32) + b
        if apply_leaky:
            h = jnp.where(h >= 0, h, NEG_SLOPE * h)
    o_ref[...] = h.astype(o_ref.dtype)


def pallas_fused_mlp(x, layers, apply_leaky_flags, *, out_dtype=None):
    """Run a chain of (w_t [K,N] bf16, b [N] f32) layers in ONE pallas_call."""
    out_dtype = out_dtype if out_dtype is not None else x.dtype
    M = x.shape[0]
    args = [x]
    flops = 0
    bytes_accessed = x.size * x.dtype.itemsize
    for w_t, b in layers:
        args.append(w_t)
        args.append(b.reshape(1, -1))
        K, N = w_t.shape
        flops += 2 * M * K * N
        bytes_accessed += w_t.size * w_t.dtype.itemsize + b.size * b.dtype.itemsize
    n_out = layers[-1][0].shape[1]
    bytes_accessed += M * n_out * jnp.dtype(out_dtype).itemsize

    kernel = functools.partial(
        _fused_mlp_kernel,
        apply_leaky_flags=tuple(bool(f) for f in apply_leaky_flags),
    )
    vmem_spec = _vmem_whole_array_spec()
    return pl.pallas_call(
        kernel,
        out_shape=jax.ShapeDtypeStruct((M, n_out), out_dtype),
        in_specs=[vmem_spec] * len(args),
        out_specs=_vmem_whole_array_spec(),
        cost_estimate=pl.CostEstimate(
            flops=flops, transcendentals=0, bytes_accessed=bytes_accessed),
    )(*args)


# ---------------------------------------------------------------------------
# Streamed kernels: one fused Linear (+ optional LeakyReLU) for layers whose
# weights are too large to keep resident.  y = leaky_relu(x @ w_t + b).
#   - one-pass variant (tk == K): 2-D grid, no accumulator scratch.
#   - K-tiled variant: 3-D grid, f32 VMEM accumulator, finalize on last K step.
# ---------------------------------------------------------------------------
def _linear_onepass_kernel(x_ref, w_ref, b_ref, o_ref, *, apply_leaky):
    y = jnp.dot(x_ref[...], w_ref[...], preferred_element_type=jnp.float32)
    y = y + b_ref[...].astype(jnp.float32)
    if apply_leaky:
        y = jnp.where(y >= 0, y, NEG_SLOPE * y)
    o_ref[...] = y.astype(o_ref.dtype)


def _linear_stream_kernel(x_ref, w_ref, b_ref, o_ref, acc_ref, *, apply_leaky):
    k = pl.program_id(2)

    @pl.when(k == 0)
    def _():
        acc_ref[...] = jnp.zeros_like(acc_ref)

    acc_ref[...] += jnp.dot(x_ref[...], w_ref[...],
                            preferred_element_type=jnp.float32)

    @pl.when(k == pl.num_programs(2) - 1)
    def _():
        y = acc_ref[...] + b_ref[...].astype(jnp.float32)
        if apply_leaky:
            y = jnp.where(y >= 0, y, NEG_SLOPE * y)
        o_ref[...] = y.astype(o_ref.dtype)


def pallas_linear_streamed(x, w_t, b, *, apply_leaky, out_dtype=None,
                           tile_cap=None, allow_one_pass=True):
    """x: [M, K] float, w_t: [K, N] bf16 (= W.T), b: [N] f32  ->  [M, N] out_dtype."""
    M, K = x.shape
    K2, N = w_t.shape
    assert K == K2 and b.shape == (N,)
    out_dtype = out_dtype if out_dtype is not None else x.dtype
    out_isz = jnp.dtype(out_dtype).itemsize

    # bf16 activations: halves x-tile DMA (x is re-fetched for every N tile)
    # and matches the bf16 cast the MXU matmul performs anyway.
    x = x.astype(jnp.bfloat16)

    cap, scoped_vmem = _vmem_profile()
    if tile_cap is not None:
        cap = tile_cap
    budget = int(scoped_vmem * 0.9)

    tm = _pick_m_tile(M, 256)
    tn = _pick_tile(N, cap)

    # Prefer a single reduction step (tk == K): no scratch accumulator, no
    # zero-init / k-epilogue, fewer ~0.35us grid-step overheads.
    one_pass = allow_one_pass and (
        _stream_vmem_bytes(tm, tn, K, 2, False, out_isz) <= budget)
    if one_pass:
        tk = K
    else:
        tk = _pick_tile(K, cap)
        while _stream_vmem_bytes(tm, tn, tk, 2, True, out_isz) > budget:
            if tk > 128 and tk >= tn:
                new_tk = _pick_tile(K, tk // 2)
                if new_tk == tk:
                    break
                tk = new_tk
            elif tn > 128:
                new_tn = _pick_tile(N, tn // 2)
                if new_tn == tn:
                    break
                tn = new_tn
            else:
                break

    # Keep >= 2 output blocks when possible so v7x's two TensorCores (grid axes
    # marked "parallel") both get a share of the layer.
    if (M // tm) * (N // tn) < 2 and tn % 256 == 0 and N % (tn // 2) == 0:
        tn //= 2

    assert M % tm == 0 and N % tn == 0 and K % tk == 0, (
        f"tiles ({tm},{tn},{tk}) must divide dims ({M},{N},{K})")

    needs_acc = not one_pass
    wbuf = 3 if _stream_vmem_bytes(tm, tn, tk, 3, needs_acc, out_isz) <= budget else 2
    b2d = b.reshape(1, N)

    if one_pass:
        grid = (M // tm, N // tn)
        in_specs = [
            pl.BlockSpec((tm, K), lambda i, j: (i, 0)),
            _weight_spec((K, tn), lambda i, j: (0, j), wbuf),
            pl.BlockSpec((1, tn), lambda i, j: (0, j)),
        ]
        out_specs = pl.BlockSpec((tm, tn), lambda i, j: (i, j))
        scratch_shapes = []
        kernel = functools.partial(_linear_onepass_kernel, apply_leaky=apply_leaky)
        dim_sem = ("parallel", "parallel")
    else:
        grid = (M // tm, N // tn, K // tk)
        in_specs = [
            pl.BlockSpec((tm, tk), lambda i, j, k: (i, k)),
            _weight_spec((tk, tn), lambda i, j, k: (k, j), wbuf),
            pl.BlockSpec((1, tn), lambda i, j, k: (0, j)),
        ]
        out_specs = pl.BlockSpec((tm, tn), lambda i, j, k: (i, j))
        scratch_shapes = [pltpu.VMEM((tm, tn), jnp.float32)]
        kernel = functools.partial(_linear_stream_kernel, apply_leaky=apply_leaky)
        dim_sem = ("parallel", "parallel", "arbitrary")

    return pl.pallas_call(
        kernel,
        out_shape=jax.ShapeDtypeStruct((M, N), out_dtype),
        grid_spec=pltpu.PrefetchScalarGridSpec(
            num_scalar_prefetch=0,
            grid=grid,
            in_specs=in_specs,
            out_specs=out_specs,
            scratch_shapes=scratch_shapes,
        ),
        compiler_params=pltpu.CompilerParams(dimension_semantics=dim_sem),
    )(x, w_t, b2d)


# ---------------------------------------------------------------------------
# Parameter init (mimics PyTorch nn.Linear default uniform init).
# Weights are transposed ONCE here (stored as [in, out]) and cast to bf16.
# ---------------------------------------------------------------------------
def init_autoencoder_params(key, dims):
    params = []
    for i in range(len(dims) - 1):
        fan_in, fan_out = dims[i], dims[i + 1]
        key, kw, kb = jax.random.split(key, 3)
        bound = 1.0 / (fan_in ** 0.5)
        w = jax.random.uniform(kw, (fan_out, fan_in), jnp.float32, -bound, bound)
        b = jax.random.uniform(kb, (fan_out,), jnp.float32, -bound, bound)
        params.append((jnp.asarray(w.T, dtype=jnp.bfloat16), b))
    return params


def _layer_bytes(w_t, b):
    return w_t.size * w_t.dtype.itemsize + b.size * b.dtype.itemsize


def autoencoder_forward(params, x, *, fuse_budget_bytes=None):
    """encoder (4 Linear, LeakyReLU between) then decoder (4 Linear, LeakyReLU between).

    Consecutive layers whose weights fit `fuse_budget_bytes` run as one fused,
    VMEM-resident pallas_call; oversized layers stream through the tiled kernel.
    Intermediates between separate calls are kept in bf16; final output matches
    the input dtype.  At this demo scale the whole network is one fused call.
    """
    if fuse_budget_bytes is None:
        fuse_budget_bytes = _default_fuse_budget()
    n = len(params)
    mid = n // 2
    flags = [not (i == mid - 1 or i == n - 1) for i in range(n)]
    final_dtype = x.dtype

    # Greedily group consecutive small layers into fused calls.
    groups = []
    pending, pending_bytes = [], 0
    for (w_t, b), f in zip(params, flags):
        lb = _layer_bytes(w_t, b)
        if lb > fuse_budget_bytes:
            if pending:
                groups.append(("fused", pending))
                pending, pending_bytes = [], 0
            groups.append(("stream", [(w_t, b, f)]))
        else:
            if pending_bytes + lb > fuse_budget_bytes and pending:
                groups.append(("fused", pending))
                pending, pending_bytes = [], 0
            pending.append((w_t, b, f))
            pending_bytes += lb
    if pending:
        groups.append(("fused", pending))

    h = x
    for gi, (kind, layers) in enumerate(groups):
        out_dtype = final_dtype if gi == len(groups) - 1 else jnp.bfloat16
        if kind == "fused":
            h = pallas_fused_mlp(h, [(w, b) for w, b, _ in layers],
                                 [f for *_, f in layers], out_dtype=out_dtype)
        else:
            (w_t, b, f), = layers
            h = pallas_linear_streamed(h, w_t, b, apply_leaky=f, out_dtype=out_dtype)
    return h


# ---------------------------------------------------------------------------
# Pure-JAX reference (same bf16 weights, f32 accumulation) for validation.
# ---------------------------------------------------------------------------
def _ref_layer(h, w_t, b, apply_leaky):
    y = jnp.dot(h.astype(jnp.bfloat16), w_t, preferred_element_type=jnp.float32) + b
    if apply_leaky:
        y = jnp.where(y >= 0, y, NEG_SLOPE * y)
    return y


def reference_forward(params, x):
    n = len(params)
    mid = n // 2
    h = x
    for idx, (w_t, b) in enumerate(params):
        h = _ref_layer(h, w_t, b, apply_leaky=not (idx == mid - 1 or idx == n - 1))
    return h


if __name__ == "__main__":
    BASE = 1024  # scaled-down stand-in for 256*256 (see TODO at top)
    dims = [
        BASE, BASE // 4, BASE // 16, BASE // 64, BASE // 256,  # encoder
        BASE // 64, BASE // 16, BASE // 4, BASE,               # decoder
    ]
    batch = 8

    key = jax.random.PRNGKey(0)
    key, kx = jax.random.split(key)
    params = init_autoencoder_params(key, dims)
    x = jax.random.normal(kx, (batch, BASE), jnp.float32)

    # Full forward: at this scale -> a single fused, VMEM-resident pallas_call.
    out = jax.block_until_ready(autoencoder_forward(params, x))
    ref = reference_forward(params, x)
    assert out.shape == (batch, BASE)
    assert jnp.allclose(out, ref, atol=2e-3, rtol=2e-3), "fused path mismatch vs reference"

    # Exercise the streamed one-pass kernel (path used by the full-scale outer
    # layers) on the first layer of the demo network.
    w0_t, b0 = params[0]
    y_ref = _ref_layer(x, w0_t, b0, apply_leaky=True)
    y_stream = jax.block_until_ready(
        pallas_linear_streamed(x, w0_t, b0, apply_leaky=True, out_dtype=jnp.float32)
    )
    assert jnp.allclose(y_stream, y_ref, atol=2e-3, rtol=2e-3), "streamed (one-pass) mismatch"

    # Also exercise the K-tiled reduction variant (used when a full-K slab does
    # not fit VMEM) by forcing small tiles and disabling the one-pass shortcut.
    y_ktiled = jax.block_until_ready(
        pallas_linear_streamed(x, w0_t, b0, apply_leaky=True, out_dtype=jnp.float32,
                               tile_cap=256, allow_one_pass=False)
    )
    assert jnp.allclose(y_ktiled, y_ref, atol=2e-3, rtol=2e-3), "streamed (K-tiled) mismatch"

    print("KERNEL_OK")
</pallas_src>

<mosaic_0001>
module attributes {stable_mosaic.version = 11 : i64} {
  func.func @_fused_mlp_kernel(%arg0: memref<8x1024xf32, #tpu.memory_space<vmem>>, %arg1: memref<1024x256xbf16, #tpu.memory_space<vmem>>, %arg2: memref<1x256xf32, #tpu.memory_space<vmem>>, %arg3: memref<256x64xbf16, #tpu.memory_space<vmem>>, %arg4: memref<1x64xf32, #tpu.memory_space<vmem>>, %arg5: memref<64x16xbf16, #tpu.memory_space<vmem>>, %arg6: memref<1x16xf32, #tpu.memory_space<vmem>>, %arg7: memref<16x4xbf16, #tpu.memory_space<vmem>>, %arg8: memref<1x4xf32, #tpu.memory_space<vmem>>, %arg9: memref<4x16xbf16, #tpu.memory_space<vmem>>, %arg10: memref<1x16xf32, #tpu.memory_space<vmem>>, %arg11: memref<16x64xbf16, #tpu.memory_space<vmem>>, %arg12: memref<1x64xf32, #tpu.memory_space<vmem>>, %arg13: memref<64x256xbf16, #tpu.memory_space<vmem>>, %arg14: memref<1x256xf32, #tpu.memory_space<vmem>>, %arg15: memref<256x1024xbf16, #tpu.memory_space<vmem>>, %arg16: memref<1x1024xf32, #tpu.memory_space<vmem>>, %arg17: memref<8x1024xf32, #tpu.memory_space<vmem>>) attributes {dimension_semantics = [], scalar_prefetch = 0 : i64, scratch_operands = 0 : i64, tpu.core_type = #tpu.core_type<tc>} {
    %c0 = arith.constant 0 : index
    %c0_0 = arith.constant 0 : index
    %0 = vector.load %arg0[%c0, %c0_0] : memref<8x1024xf32, #tpu.memory_space<vmem>>, vector<8x1024xf32>
    %c0_1 = arith.constant 0 : index
    %c0_2 = arith.constant 0 : index
    %1 = vector.load %arg1[%c0_1, %c0_2] : memref<1024x256xbf16, #tpu.memory_space<vmem>>, vector<1024x256xbf16>
    %c0_3 = arith.constant 0 : index
    %c0_4 = arith.constant 0 : index
    %2 = vector.load %arg2[%c0_3, %c0_4] : memref<1x256xf32, #tpu.memory_space<vmem>>, vector<1x256xf32>
    %3 = arith.truncf %0 : vector<8x1024xf32> to vector<8x1024xbf16>
    %cst = arith.constant dense<0.000000e+00> : vector<8x256xf32>
    %4 = tpu.matmul %3, %1, %cst {dimension_numbers = #tpu.dot_dimension_numbers<[1], [0], [0], [1], [0, 0, 1, 1], [], []>} : vector<8x1024xbf16>, vector<1024x256xbf16>, vector<8x256xf32> -> vector<8x256xf32>
    %5 = vector.broadcast %2 : vector<1x256xf32> to vector<8x256xf32>
    %6 = arith.addf %4, %5 : vector<8x256xf32>
    %cst_5 = arith.constant 0.000000e+00 : f32
    %7 = vector.broadcast %cst_5 : f32 to vector<8x256xf32>
    %8 = arith.cmpf oge, %6, %7 : vector<8x256xf32>
    %cst_6 = arith.constant 0.00999999977 : f32
    %9 = vector.broadcast %cst_6 : f32 to vector<8x256xf32>
    %10 = arith.mulf %9, %6 : vector<8x256xf32>
    %11 = arith.select %8, %6, %10 : vector<8x256xi1>, vector<8x256xf32>
    %c0_7 = arith.constant 0 : index
    %c0_8 = arith.constant 0 : index
    %12 = vector.load %arg3[%c0_7, %c0_8] : memref<256x64xbf16, #tpu.memory_space<vmem>>, vector<256x64xbf16>
    %c0_9 = arith.constant 0 : index
    %c0_10 = arith.constant 0 : index
    %13 = vector.load %arg4[%c0_9, %c0_10] : memref<1x64xf32, #tpu.memory_space<vmem>>, vector<1x64xf32>
    %14 = arith.truncf %11 : vector<8x256xf32> to vector<8x256xbf16>
    %cst_11 = arith.constant dense<0.000000e+00> : vector<8x64xf32>
    %15 = tpu.matmul %14, %12, %cst_11 {dimension_numbers = #tpu.dot_dimension_numbers<[1], [0], [0], [1], [0, 0, 1, 1], [], []>} : vector<8x256xbf16>, vector<256x64xbf16>, vector<8x64xf32> -> vector<8x64xf32>
    %16 = vector.broadcast %13 : vector<1x64xf32> to vector<8x64xf32>
    %17 = arith.addf %15, %16 : vector<8x64xf32>
    %cst_12 = arith.constant 0.000000e+00 : f32
    %18 = vector.broadcast %cst_12 : f32 to vector<8x64xf32>
    %19 = arith.cmpf oge, %17, %18 : vector<8x64xf32>
    %cst_13 = arith.constant 0.00999999977 : f32
    %20 = vector.broadcast %cst_13 : f32 to vector<8x64xf32>
    %21 = arith.mulf %20, %17 : vector<8x64xf32>
    %22 = arith.select %19, %17, %21 : vector<8x64xi1>, vector<8x64xf32>
    %c0_14 = arith.constant 0 : index
    %c0_15 = arith.constant 0 : index
    %23 = vector.load %arg5[%c0_14, %c0_15] : memref<64x16xbf16, #tpu.memory_space<vmem>>, vector<64x16xbf16>
    %c0_16 = arith.constant 0 : index
    %c0_17 = arith.constant 0 : index
    %24 = vector.load %arg6[%c0_16, %c0_17] : memref<1x16xf32, #tpu.memory_space<vmem>>, vector<1x16xf32>
    %25 = arith.truncf %22 : vector<8x64xf32> to vector<8x64xbf16>
    %cst_18 = arith.constant dense<0.000000e+00> : vector<8x16xf32>
    %26 = tpu.matmul %25, %23, %cst_18 {dimension_numbers = #tpu.dot_dimension_numbers<[1], [0], [0], [1], [0, 0, 1, 1], [], []>} : vector<8x64xbf16>, vector<64x16xbf16>, vector<8x16xf32> -> vector<8x16xf32>
    %27 = vector.broadcast %24 : vector<1x16xf32> to vector<8x16xf32>
    %28 = arith.addf %26, %27 : vector<8x16xf32>
    %cst_19 = arith.constant 0.000000e+00 : f32
    %29 = vector.broadcast %cst_19 : f32 to vector<8x16xf32>
    %30 = arith.cmpf oge, %28, %29 : vector<8x16xf32>
    %cst_20 = arith.constant 0.00999999977 : f32
    %31 = vector.broadcast %cst_20 : f32 to vector<8x16xf32>
    %32 = arith.mulf %31, %28 : vector<8x16xf32>
    %33 = arith.select %30, %28, %32 : vector<8x16xi1>, vector<8x16xf32>
    %c0_21 = arith.constant 0 : index
    %c0_22 = arith.constant 0 : index
    %34 = vector.load %arg7[%c0_21, %c0_22] : memref<16x4xbf16, #tpu.memory_space<vmem>>, vector<16x4xbf16>
    %c0_23 = arith.constant 0 : index
    %c0_24 = arith.constant 0 : index
    %35 = vector.load %arg8[%c0_23, %c0_24] : memref<1x4xf32, #tpu.memory_space<vmem>>, vector<1x4xf32>
    %36 = arith.truncf %33 : vector<8x16xf32> to vector<8x16xbf16>
    %cst_25 = arith.constant dense<0.000000e+00> : vector<8x4xf32>
    %37 = tpu.matmul %36, %34, %cst_25 {dimension_numbers = #tpu.dot_dimension_numbers<[1], [0], [0], [1], [0, 0, 1, 1], [], []>} : vector<8x16xbf16>, vector<16x4xbf16>, vector<8x4xf32> -> vector<8x4xf32>
    %38 = vector.broadcast %35 : vector<1x4xf32> to vector<8x4xf32>
    %39 = arith.addf %37, %38 : vector<8x4xf32>
    %c0_26 = arith.constant 0 : index
    %c0_27 = arith.constant 0 : index
    %40 = vector.load %arg9[%c0_26, %c0_27] : memref<4x16xbf16, #tpu.memory_space<vmem>>, vector<4x16xbf16>
    %c0_28 = arith.constant 0 : index
    %c0_29 = arith.constant 0 : index
    %41 = vector.load %arg10[%c0_28, %c0_29] : memref<1x16xf32, #tpu.memory_space<vmem>>, vector<1x16xf32>
    %42 = arith.truncf %39 : vector<8x4xf32> to vector<8x4xbf16>
    %cst_30 = arith.constant dense<0.000000e+00> : vector<8x16xf32>
    %43 = tpu.matmul %42, %40, %cst_30 {dimension_numbers = #tpu.dot_dimension_numbers<[1], [0], [0], [1], [0, 0, 1, 1], [], []>} : vector<8x4xbf16>, vector<4x16xbf16>, vector<8x16xf32> -> vector<8x16xf32>
    %44 = vector.broadcast %41 : vector<1x16xf32> to vector<8x16xf32>
    %45 = arith.addf %43, %44 : vector<8x16xf32>
    %cst_31 = arith.constant 0.000000e+00 : f32
    %46 = vector.broadcast %cst_31 : f32 to vector<8x16xf32>
    %47 = arith.cmpf oge, %45, %46 : vector<8x16xf32>
    %cst_32 = arith.constant 0.00999999977 : f32
    %48 = vector.broadcast %cst_32 : f32 to vector<8x16xf32>
    %49 = arith.mulf %48, %45 : vector<8x16xf32>
    %50 = arith.select %47, %45, %49 : vector<8x16xi1>, vector<8x16xf32>
    %c0_33 = arith.constant 0 : index
    %c0_34 = arith.constant 0 : index
    %51 = vector.load %arg11[%c0_33, %c0_34] : memref<16x64xbf16, #tpu.memory_space<vmem>>, vector<16x64xbf16>
    %c0_35 = arith.constant 0 : index
    %c0_36 = arith.constant 0 : index
    %52 = vector.load %arg12[%c0_35, %c0_36] : memref<1x64xf32, #tpu.memory_space<vmem>>, vector<1x64xf32>
    %53 = arith.truncf %50 : vector<8x16xf32> to vector<8x16xbf16>
    %cst_37 = arith.constant dense<0.000000e+00> : vector<8x64xf32>
    %54 = tpu.matmul %53, %51, %cst_37 {dimension_numbers = #tpu.dot_dimension_numbers<[1], [0], [0], [1], [0, 0, 1, 1], [], []>} : vector<8x16xbf16>, vector<16x64xbf16>, vector<8x64xf32> -> vector<8x64xf32>
    %55 = vector.broadcast %52 : vector<1x64xf32> to vector<8x64xf32>
    %56 = arith.addf %54, %55 : vector<8x64xf32>
    %cst_38 = arith.constant 0.000000e+00 : f32
    %57 = vector.broadcast %cst_38 : f32 to vector<8x64xf32>
    %58 = arith.cmpf oge, %56, %57 : vector<8x64xf32>
    %cst_39 = arith.constant 0.00999999977 : f32
    %59 = vector.broadcast %cst_39 : f32 to vector<8x64xf32>
    %60 = arith.mulf %59, %56 : vector<8x64xf32>
    %61 = arith.select %58, %56, %60 : vector<8x64xi1>, vector<8x64xf32>
    %c0_40 = arith.constant 0 : index
    %c0_41 = arith.constant 0 : index
    %62 = vector.load %arg13[%c0_40, %c0_41] : memref<64x256xbf16, #tpu.memory_space<vmem>>, vector<64x256xbf16>
    %c0_42 = arith.constant 0 : index
    %c0_43 = arith.constant 0 : index
    %63 = vector.load %arg14[%c0_42, %c0_43] : memref<1x256xf32, #tpu.memory_space<vmem>>, vector<1x256xf32>
    %64 = arith.truncf %61 : vector<8x64xf32> to vector<8x64xbf16>
    %cst_44 = arith.constant dense<0.000000e+00> : vector<8x256xf32>
    %65 = tpu.matmul %64, %62, %cst_44 {dimension_numbers = #tpu.dot_dimension_numbers<[1], [0], [0], [1], [0, 0, 1, 1], [], []>} : vector<8x64xbf16>, vector<64x256xbf16>, vector<8x256xf32> -> vector<8x256xf32>
    %66 = vector.broadcast %63 : vector<1x256xf32> to vector<8x256xf32>
    %67 = arith.addf %65, %66 : vector<8x256xf32>
    %cst_45 = arith.constant 0.000000e+00 : f32
    %68 = vector.broadcast %cst_45 : f32 to vector<8x256xf32>
    %69 = arith.cmpf oge, %67, %68 : vector<8x256xf32>
    %cst_46 = arith.constant 0.00999999977 : f32
    %70 = vector.broadcast %cst_46 : f32 to vector<8x256xf32>
    %71 = arith.mulf %70, %67 : vector<8x256xf32>
    %72 = arith.select %69, %67, %71 : vector<8x256xi1>, vector<8x256xf32>
    %c0_47 = arith.constant 0 : index
    %c0_48 = arith.constant 0 : index
    %73 = vector.load %arg15[%c0_47, %c0_48] : memref<256x1024xbf16, #tpu.memory_space<vmem>>, vector<256x1024xbf16>
    %c0_49 = arith.constant 0 : index
    %c0_50 = arith.constant 0 : index
    %74 = vector.load %arg16[%c0_49, %c0_50] : memref<1x1024xf32, #tpu.memory_space<vmem>>, vector<1x1024xf32>
    %75 = arith.truncf %72 : vector<8x256xf32> to vector<8x256xbf16>
    %cst_51 = arith.constant dense<0.000000e+00> : vector<8x1024xf32>
    %76 = tpu.matmul %75, %73, %cst_51 {dimension_numbers = #tpu.dot_dimension_numbers<[1], [0], [0], [1], [0, 0, 1, 1], [], []>} : vector<8x256xbf16>, vector<256x1024xbf16>, vector<8x1024xf32> -> vector<8x1024xf32>
    %77 = vector.broadcast %74 : vector<1x1024xf32> to vector<8x1024xf32>
    %78 = arith.addf %76, %77 : vector<8x1024xf32>
    %c0_52 = arith.constant 0 : index
    %c0_53 = arith.constant 0 : index
    %79 = vector.load %arg17[%c0_52, %c0_53] : memref<8x1024xf32, #tpu.memory_space<vmem>>, vector<8x1024xf32>
    tpu.vector_store %arg17[%c0_52, %c0_53], %78 {strides = array<i32>} : memref<8x1024xf32, #tpu.memory_space<vmem>>, vector<8x1024xf32>,
    return
  }
}

</mosaic_0001>

<llo_original>
// kernel: tpu_custom_call.1
$region0: #{tpu_custom_call.1}
  #allocation0 [shape = 'u32[]', space=smem, size = 0x4, offset = 0x4, fixed_abs, tag = 'smem constant byte address 0x4 - core index']
  #allocation1 [shape = 'u32[72,128]{1,0:T(1,128)}', space=vmem, size = 0x9000, scoped, tag = 'internal scratch']
  %s0 = inlined_call_operand.vmem [shape: f32[8,1024], index: 0, kind: input, shape index: {}]
  %s1 = inlined_call_operand.hbm [shape: bf16[1024,256], index: 1, kind: input, shape index: {}]
  %s2 = inlined_call_operand.vmem [shape: f32[1,256], index: 2, kind: input, shape index: {}]
  %s3 = inlined_call_operand.vmem [shape: bf16[256,64], index: 3, kind: input, shape index: {}]
  %s4 = inlined_call_operand.vmem [shape: f32[1,64], index: 4, kind: input, shape index: {}]
  %s5 = inlined_call_operand.vmem [shape: bf16[64,16], index: 5, kind: input, shape index: {}]
  %s6 = inlined_call_operand.vmem [shape: f32[1,16], index: 6, kind: input, shape index: {}]
  %s7 = inlined_call_operand.vmem [shape: bf16[16,4], index: 7, kind: input, shape index: {}]
  %s8 = inlined_call_operand.vmem [shape: f32[1,4], index: 8, kind: input, shape index: {}]
  %s9 = inlined_call_operand.vmem [shape: bf16[4,16], index: 9, kind: input, shape index: {}]
  %s10 = inlined_call_operand.vmem [shape: f32[1,16], index: 10, kind: input, shape index: {}]
  %s11 = inlined_call_operand.vmem [shape: bf16[16,64], index: 11, kind: input, shape index: {}]
  %s12 = inlined_call_operand.vmem [shape: f32[1,64], index: 12, kind: input, shape index: {}]
  %s13 = inlined_call_operand.vmem [shape: bf16[64,256], index: 13, kind: input, shape index: {}]
  %s14 = inlined_call_operand.vmem [shape: f32[1,256], index: 14, kind: input, shape index: {}]
  %s15 = inlined_call_operand.hbm [shape: bf16[256,1024], index: 15, kind: input, shape index: {}]
  %s16 = inlined_call_operand.vmem [shape: f32[1,1024], index: 16, kind: input, shape index: {}]
  %s17 = inlined_call_operand.hbm [shape: f32[8,1024], index: 17, kind: output, shape index: {}]
  %s18 = sld [smem:[#allocation0]]
  $region86: #{tpu_custom_call.1} parent=0
    _
  %s20 = ssub.s32 1, %s18
  %s21 = scalar_select 0, %s20, %s18
  $region1: #{tpu_custom_call.1} parent=0
    #allocation2 [shape = 'u8[524288]{0}', space=vmem, size = 0x80000, scoped, tag = 'input window, operand 1, single buffered']
    #allocation3 [shape = 's32[1]{0}', space=sflag, size = 0x4, scoped, tag = 'scoped memory for tpu_custom_call.1']
    #allocation4 [shape = 's32[1]{0}', space=sflag, size = 0x4, scoped, tag = 'scoped memory for tpu_custom_call.1']
    #allocation5 [shape = 'u8[524288]{0}', space=vmem, size = 0x80000, scoped, tag = 'input window, operand 15, single buffered']
    #allocation6 [shape = 's32[1]{0}', space=sflag, size = 0x4, scoped, tag = 'scoped memory for tpu_custom_call.1']
    #allocation7 [shape = 'u8[32768]{0}', space=vmem, size = 0x8000, scoped, tag = 'output window, operand 0, single buffered']
    %22 = vsyncpa [#allocation3], 0
    %23 = vsyncpa [#allocation6], 0
    %24 = vsyncpa [#allocation4], 0
    // Predicated region
    $region2: #{tpu_custom_call.1} parent=1 // pred_check
      _
    $region3: #{tpu_custom_call.1} parent=1 // pred_check_branch
      %26 = sbr.rel (0) target = $region5
    $region4: #{tpu_custom_call.1} parent=1 // pred_region
      _
    $region5: #{tpu_custom_call.1} parent=1 // pred_fallthru
      _
    // Predicated region
    $region6: #{tpu_custom_call.1} parent=1 // pred_check
      _
    $region7: #{tpu_custom_call.1} parent=1 // pred_check_branch
      %28 = sbr.rel (0) target = $region9
    $region8: #{tpu_custom_call.1} parent=1 // pred_region
      %30 = vsyncadd [#allocation3], 0
      %s31 = sshll.u32 %s1, 4
      %s32 = int_to_ptr.hbm [resolvable:$true] %s31
      %s33 = sshll.u32 [#allocation2], 4
      %s34 = int_to_ptr.vmem [resolvable:$true] %s33
      %39 = dma.hbm_to_vmem [thread:$0]  %s32, 16384, %s34, [#allocation3], 128, 128, 8
    $region9: #{tpu_custom_call.1} parent=1 // pred_fallthru
      _
    // Predicated region
    $region10: #{tpu_custom_call.1} parent=1 // pred_check
      _
    $region11: #{tpu_custom_call.1} parent=1 // pred_check_branch
      %41 = sbr.rel (0) target = $region13
    $region12: #{tpu_custom_call.1} parent=1 // pred_region
      _
    $region13: #{tpu_custom_call.1} parent=1 // pred_fallthru
      _
    // Predicated region
    $region14: #{tpu_custom_call.1} parent=1 // pred_check
      _
    $region15: #{tpu_custom_call.1} parent=1 // pred_check_branch
      %43 = sbr.rel (0) target = $region17
    $region16: #{tpu_custom_call.1} parent=1 // pred_region
      _
    $region17: #{tpu_custom_call.1} parent=1 // pred_fallthru
      _
    // Predicated region
    $region18: #{tpu_custom_call.1} parent=1 // pred_check
      _
    $region19: #{tpu_custom_call.1} parent=1 // pred_check_branch
      %45 = sbr.rel (0) target = $region21
    $region20: #{tpu_custom_call.1} parent=1 // pred_region
      _
    $region21: #{tpu_custom_call.1} parent=1 // pred_fallthru
      _
    // Predicated region
    $region22: #{tpu_custom_call.1} parent=1 // pred_check
      _
    $region23: #{tpu_custom_call.1} parent=1 // pred_check_branch
      %47 = sbr.rel (0) target = $region25
    $region24: #{tpu_custom_call.1} parent=1 // pred_region
      _
    $region25: #{tpu_custom_call.1} parent=1 // pred_fallthru
      _
    // Predicated region
    $region26: #{tpu_custom_call.1} parent=1 // pred_check
      _
    $region27: #{tpu_custom_call.1} parent=1 // pred_check_branch
      %49 = sbr.rel (0) target = $region29
    $region28: #{tpu_custom_call.1} parent=1 // pred_region
      _
    $region29: #{tpu_custom_call.1} parent=1 // pred_fallthru
      _
    // Predicated region
    $region30: #{tpu_custom_call.1} parent=1 // pred_check
      _
    $region31: #{tpu_custom_call.1} parent=1 // pred_check_branch
      %51 = sbr.rel (0) target = $region33
    $region32: #{tpu_custom_call.1} parent=1 // pred_region
      _
    $region33: #{tpu_custom_call.1} parent=1 // pred_fallthru
      _
    // Predicated region
    $region34: #{tpu_custom_call.1} parent=1 // pred_check
      _
    $region35: #{tpu_custom_call.1} parent=1 // pred_check_branch
      %53 = sbr.rel (0) target = $region37
    $region36: #{tpu_custom_call.1} parent=1 // pred_region
      _
    $region37: #{tpu_custom_call.1} parent=1 // pred_fallthru
      _
    // Predicated region
    $region38: #{tpu_custom_call.1} parent=1 // pred_check
      _
    $region39: #{tpu_custom_call.1} parent=1 // pred_check_branch
      %55 = sbr.rel (0) target = $region41
    $region40: #{tpu_custom_call.1} parent=1 // pred_region
      _
    $region41: #{tpu_custom_call.1} parent=1 // pred_fallthru
      _
    // Predicated region
    $region42: #{tpu_custom_call.1} parent=1 // pred_check
      _
    $region43: #{tpu_custom_call.1} parent=1 // pred_check_branch
      %57 = sbr.rel (0) target = $region45
    $region44: #{tpu_custom_call.1} parent=1 // pred_region
      _
    $region45: #{tpu_custom_call.1} parent=1 // pred_fallthru
      _
    // Predicated region
    $region46: #{tpu_custom_call.1} parent=1 // pred_check
      _
    $region47: #{tpu_custom_call.1} parent=1 // pred_check_branch
      %59 = sbr.rel (0) target = $region49
    $region48: #{tpu_custom_call.1} parent=1 // pred_region
      _
    $region49: #{tpu_custom_call.1} parent=1 // pred_fallthru
      _
    // Predicated region
    $region50: #{tpu_custom_call.1} parent=1 // pred_check
      _
    $region51: #{tpu_custom_call.1} parent=1 // pred_check_branch
      %61 = sbr.rel (0) target = $region53
    $region52: #{tpu_custom_call.1} parent=1 // pred_region
      _
    $region53: #{tpu_custom_call.1} parent=1 // pred_fallthru
      _
    // Predicated region
    $region54: #{tpu_custom_call.1} parent=1 // pred_check
      _
    $region55: #{tpu_custom_call.1} parent=1 // pred_check_branch
      %63 = sbr.rel (0) target = $region57
    $region56: #{tpu_custom_call.1} parent=1 // pred_region
      _
    $region57: #{tpu_custom_call.1} parent=1 // pred_fallthru
      _
    // Predicated region
    $region58: #{tpu_custom_call.1} parent=1 // pred_check
      _
    $region59: #{tpu_custom_call.1} parent=1 // pred_check_branch
      %65 = sbr.rel (0) target = $region61
    $region60: #{tpu_custom_call.1} parent=1 // pred_region
      _
    $region61: #{tpu_custom_call.1} parent=1 // pred_fallthru
      _
    // Predicated region
    $region62: #{tpu_custom_call.1} parent=1 // pred_check
      _
    $region63: #{tpu_custom_call.1} parent=1 // pred_check_branch
      %67 = sbr.rel (0) target = $region65
    $region64: #{tpu_custom_call.1} parent=1 // pred_region
      %69 = vsyncadd [#allocation6], 0
      %s70 = sshll.u32 %s15, 4
      %s71 = int_to_ptr.hbm [resolvable:$true] %s70
      %s72 = sshll.u32 [#allocation5], 4
      %s73 = int_to_ptr.vmem [resolvable:$true] %s72
      %78 = dma.hbm_to_vmem [thread:$0]  %s71, 16384, %s73, [#allocation6], 512, 512, 32
    $region65: #{tpu_custom_call.1} parent=1 // pred_fallthru
      _
    // Predicated region
    $region66: #{tpu_custom_call.1} parent=1 // pred_check
      _
    $region67: #{tpu_custom_call.1} parent=1 // pred_check_branch
      %80 = sbr.rel (0) target = $region69
    $region68: #{tpu_custom_call.1} parent=1 // pred_region
      _
    $region69: #{tpu_custom_call.1} parent=1 // pred_fallthru
      _
    // Predicated region
    $region70: #{tpu_custom_call.1} parent=1 // pred_check
      _
    $region71: #{tpu_custom_call.1} parent=1 // pred_check_branch
      %82 = sbr.rel (0) target = $region73
    $region72: #{tpu_custom_call.1} parent=1 // pred_region
      %84 = dma.done [#allocation3], 16384
    $region73: #{tpu_custom_call.1} parent=1 // pred_fallthru
      _
    // Predicated region
    $region74: #{tpu_custom_call.1} parent=1 // pred_check
      _
    $region75: #{tpu_custom_call.1} parent=1 // pred_check_branch
      %86 = sbr.rel (0) target = $region77
    $region76: #{tpu_custom_call.1} parent=1 // pred_region
      %88 = dma.done [#allocation6], 16384
    $region77: #{tpu_custom_call.1} parent=1 // pred_fallthru
      _
    %v90 = vld [vmem:[%s0] sm:$0xff]
    %v91 = vld [vmem:[%s0 + $0x8] sm:$0xff]
    %v92 = vld [vmem:[%s0 + $0x10] sm:$0xff]
    %v93 = vld [vmem:[%s0 + $0x18] sm:$0xff]
    %v94 = vld [vmem:[%s0 + $0x20] sm:$0xff]
    %v95 = vld [vmem:[%s0 + $0x28] sm:$0xff]
    %v96 = vld [vmem:[%s0 + $0x30] sm:$0xff]
    %v97 = vld [vmem:[%s0 + $0x38] sm:$0xff]
    %v98 = vld [vmem:[#allocation2] sm:$0xff]
    %v99 = vld [vmem:[#allocation2 + $0x8] sm:$0xff]
    %v100 = vld [vmem:[#allocation2 + $0x10] sm:$0xff]
    %v101 = vld [vmem:[#allocation2 + $0x18] sm:$0xff]
    %v102 = vld [vmem:[#allocation2 + $0x20] sm:$0xff]
    %v103 = vld [vmem:[#allocation2 + $0x28] sm:$0xff]
    %v104 = vld [vmem:[#allocation2 + $0x30] sm:$0xff]
    %v105 = vld [vmem:[#allocation2 + $0x38] sm:$0xff]
    %v106 = vld [vmem:[#allocation2 + $0x40] sm:$0xff]
    %v107 = vld [vmem:[#allocation2 + $0x48] sm:$0xff]
    %v108 = vld [vmem:[#allocation2 + $0x50] sm:$0xff]
    %v109 = vld [vmem:[#allocation2 + $0x58] sm:$0xff]
    %v110 = vld [vmem:[#allocation2 + $0x60] sm:$0xff]
    %v111 = vld [vmem:[#allocation2 + $0x68] sm:$0xff]
    %v112 = vld [vmem:[#allocation2 + $0x70] sm:$0xff]
    %v113 = vld [vmem:[#allocation2 + $0x78] sm:$0xff]
    %v114 = vld [vmem:[#allocation2 + $0x80] sm:$0xff]
    %v115 = vld [vmem:[#allocation2 + $0x88] sm:$0xff]
    %v116 = vld [vmem:[#allocation2 + $0x90] sm:$0xff]
    %v117 = vld [vmem:[#allocation2 + $0x98] sm:$0xff]
    %v118 = vld [vmem:[#allocation2 + $0xa0] sm:$0xff]
    %v119 = vld [vmem:[#allocation2 + $0xa8] sm:$0xff]
    %v120 = vld [vmem:[#allocation2 + $0xb0] sm:$0xff]
    %v121 = vld [vmem:[#allocation2 + $0xb8] sm:$0xff]
    %v122 = vld [vmem:[#allocation2 + $0xc0] sm:$0xff]
    %v123 = vld [vmem:[#allocation2 + $0xc8] sm:$0xff]
    %v124 = vld [vmem:[#allocation2 + $0xd0] sm:$0xff]
    %v125 = vld [vmem:[#allocation2 + $0xd8] sm:$0xff]
    %v126 = vld [vmem:[#allocation2 + $0xe0] sm:$0xff]
    %v127 = vld [vmem:[#allocation2 + $0xe8] sm:$0xff]
    %v128 = vld [vmem:[#allocation2 + $0xf0] sm:$0xff]
    %v129 = vld [vmem:[#allocation2 + $0xf8] sm:$0xff]
    %v130 = vld [vmem:[#allocation2 + $0x100] sm:$0xff]
    %v131 = vld [vmem:[#allocation2 + $0x108] sm:$0xff]
    %v132 = vld [vmem:[#allocation2 + $0x110] sm:$0xff]
    %v133 = vld [vmem:[#allocation2 + $0x118] sm:$0xff]
    %v134 = vld [vmem:[#allocation2 + $0x120] sm:$0xff]
    %v135 = vld [vmem:[#allocation2 + $0x128] sm:$0xff]
    %v136 = vld [vmem:[#allocation2 + $0x130] sm:$0xff]
    %v137 = vld [vmem:[#allocation2 + $0x138] sm:$0xff]
    %v138 = vld [vmem:[#allocation2 + $0x140] sm:$0xff]
    %v139 = vld [vmem:[#allocation2 + $0x148] sm:$0xff]
    %v140 = vld [vmem:[#allocation2 + $0x150] sm:$0xff]
    %v141 = vld [vmem:[#allocation2 + $0x158] sm:$0xff]
    %v142 = vld [vmem:[#allocation2 + $0x160] sm:$0xff]
    %v143 = vld [vmem:[#allocation2 + $0x168] sm:$0xff]
    %v144 = vld [vmem:[#allocation2 + $0x170] sm:$0xff]
    %v145 = vld [vmem:[#allocation2 + $0x178] sm:$0xff]
    %v146 = vld [vmem:[#allocation2 + $0x180] sm:$0xff]
    %v147 = vld [vmem:[#allocation2 + $0x188] sm:$0xff]
    %v148 = vld [vmem:[#allocation2 + $0x190] sm:$0xff]
    %v149 = vld [vmem:[#allocation2 + $0x198] sm:$0xff]
    %v150 = vld [vmem:[#allocation2 + $0x1a0] sm:$0xff]
    %v151 = vld [vmem:[#allocation2 + $0x1a8] sm:$0xff]
    %v152 = vld [vmem:[#allocation2 + $0x1b0] sm:$0xff]
    %v153 = vld [vmem:[#allocation2 + $0x1b8] sm:$0xff]
    %v154 = vld [vmem:[#allocation2 + $0x1c0] sm:$0xff]
    %v155 = vld [vmem:[#allocation2 + $0x1c8] sm:$0xff]
    %v156 = vld [vmem:[#allocation2 + $0x1d0] sm:$0xff]
    %v157 = vld [vmem:[#allocation2 + $0x1d8] sm:$0xff]
    %v158 = vld [vmem:[#allocation2 + $0x1e0] sm:$0xff]
    %v159 = vld [vmem:[#allocation2 + $0x1e8] sm:$0xff]
    %v160 = vld [vmem:[#allocation2 + $0x1f0] sm:$0xff]
    %v161 = vld [vmem:[#allocation2 + $0x1f8] sm:$0xff]
    %v162 = vld [vmem:[#allocation2 + $0x200] sm:$0xff]
    %v163 = vld [vmem:[#allocation2 + $0x208] sm:$0xff]
    %v164 = vld [vmem:[#allocation2 + $0x210] sm:$0xff]
    %v165 = vld [vmem:[#allocation2 + $0x218] sm:$0xff]
    %v166 = vld [vmem:[#allocation2 + $0x220] sm:$0xff]
    %v167 = vld [vmem:[#allocation2 + $0x228] sm:$0xff]
    %v168 = vld [vmem:[#allocation2 + $0x230] sm:$0xff]
    %v169 = vld [vmem:[#allocation2 + $0x238] sm:$0xff]
    %v170 = vld [vmem:[#allocation2 + $0x240] sm:$0xff]
    %v171 = vld [vmem:[#allocation2 + $0x248] sm:$0xff]
    %v172 = vld [vmem:[#allocation2 + $0x250] sm:$0xff]
    %v173 = vld [vmem:[#allocation2 + $0x258] sm:$0xff]
    %v174 = vld [vmem:[#allocation2 + $0x260] sm:$0xff]
    %v175 = vld [vmem:[#allocation2 + $0x268] sm:$0xff]
    %v176 = vld [vmem:[#allocation2 + $0x270] sm:$0xff]
    %v177 = vld [vmem:[#allocation2 + $0x278] sm:$0xff]
    %v178 = vld [vmem:[#allocation2 + $0x280] sm:$0xff]
    %v179 = vld [vmem:[#allocation2 + $0x288] sm:$0xff]
    %v180 = vld [vmem:[#allocation2 + $0x290] sm:$0xff]
    %v181 = vld [vmem:[#allocation2 + $0x298] sm:$0xff]
    %v182 = vld [vmem:[#allocation2 + $0x2a0] sm:$0xff]
    %v183 = vld [vmem:[#allocation2 + $0x2a8] sm:$0xff]
    %v184 = vld [vmem:[#allocation2 + $0x2b0] sm:$0xff]
    %v185 = vld [vmem:[#allocation2 + $0x2b8] sm:$0xff]
    %v186 = vld [vmem:[#allocation2 + $0x2c0] sm:$0xff]
    %v187 = vld [vmem:[#allocation2 + $0x2c8] sm:$0xff]
    %v188 = vld [vmem:[#allocation2 + $0x2d0] sm:$0xff]
    %v189 = vld [vmem:[#allocation2 + $0x2d8] sm:$0xff]
    %v190 = vld [vmem:[#allocation2 + $0x2e0] sm:$0xff]
    %v191 = vld [vmem:[#allocation2 + $0x2e8] sm:$0xff]
    %v192 = vld [vmem:[#allocation2 + $0x2f0] sm:$0xff]
    %v193 = vld [vmem:[#allocation2 + $0x2f8] sm:$0xff]
    %v194 = vld [vmem:[#allocation2 + $0x300] sm:$0xff]
    %v195 = vld [vmem:[#allocation2 + $0x308] sm:$0xff]
    %v196 = vld [vmem:[#allocation2 + $0x310] sm:$0xff]
    %v197 = vld [vmem:[#allocation2 + $0x318] sm:$0xff]
    %v198 = vld [vmem:[#allocation2 + $0x320] sm:$0xff]
    %v199 = vld [vmem:[#allocation2 + $0x328] sm:$0xff]
    %v200 = vld [vmem:[#allocation2 + $0x330] sm:$0xff]
    %v201 = vld [vmem:[#allocation2 + $0x338] sm:$0xff]
    %v202 = vld [vmem:[#allocation2 + $0x340] sm:$0xff]
    %v203 = vld [vmem:[#allocation2 + $0x348] sm:$0xff]
    %v204 = vld [vmem:[#allocation2 + $0x350] sm:$0xff]
    %v205 = vld [vmem:[#allocation2 + $0x358] sm:$0xff]
    %v206 = vld [vmem:[#allocation2 + $0x360] sm:$0xff]
    %v207 = vld [vmem:[#allocation2 + $0x368] sm:$0xff]
    %v208 = vld [vmem:[#allocation2 + $0x370] sm:$0xff]
    %v209 = vld [vmem:[#allocation2 + $0x378] sm:$0xff]
    %v210 = vld [vmem:[#allocation2 + $0x380] sm:$0xff]
    %v211 = vld [vmem:[#allocation2 + $0x388] sm:$0xff]
    %v212 = vld [vmem:[#allocation2 + $0x390] sm:$0xff]
    %v213 = vld [vmem:[#allocation2 + $0x398] sm:$0xff]
    %v214 = vld [vmem:[#allocation2 + $0x3a0] sm:$0xff]
    %v215 = vld [vmem:[#allocation2 + $0x3a8] sm:$0xff]
    %v216 = vld [vmem:[#allocation2 + $0x3b0] sm:$0xff]
    %v217 = vld [vmem:[#allocation2 + $0x3b8] sm:$0xff]
    %v218 = vld [vmem:[#allocation2 + $0x3c0] sm:$0xff]
    %v219 = vld [vmem:[#allocation2 + $0x3c8] sm:$0xff]
    %v220 = vld [vmem:[#allocation2 + $0x3d0] sm:$0xff]
    %v221 = vld [vmem:[#allocation2 + $0x3d8] sm:$0xff]
    %v222 = vld [vmem:[#allocation2 + $0x3e0] sm:$0xff]
    %v223 = vld [vmem:[#allocation2 + $0x3e8] sm:$0xff]
    %v224 = vld [vmem:[#allocation2 + $0x3f0] sm:$0xff]
    %v225 = vld [vmem:[#allocation2 + $0x3f8] sm:$0xff]
    %v226 = vld [vmem:[%s2] sm:$0x3]
    %v227 = vpack.c.bf16 %v90, %v90
    %v228 = vpack.c.bf16 %v91, %v91
    %v229 = vpack.c.bf16 %v92, %v92
    %v230 = vpack.c.bf16 %v93, %v93
    %v231 = vpack.c.bf16 %v94, %v94
    %v232 = vpack.c.bf16 %v95, %v95
    %v233 = vpack.c.bf16 %v96, %v96
    %v234 = vpack.c.bf16 %v97, %v97
    %v236 = vperm.slane %v226, 0
    %v237 = vperm.slane %v226, 1
    %v368 = vunpack.c.l.b16 %v98
    %v369 = vunpack.c.h.b16 %v98
    %v370 = vunpack.c.l.b16 %v99
    %v371 = vunpack.c.h.b16 %v99
    %v372 = vunpack.c.l.b16 %v100
    %v373 = vunpack.c.h.b16 %v100
    %v374 = vunpack.c.l.b16 %v101
    %v375 = vunpack.c.h.b16 %v101
    %v376 = vunpack.c.l.b16 %v102
    %v377 = vunpack.c.h.b16 %v102
    %v378 = vunpack.c.l.b16 %v103
    %v379 = vunpack.c.h.b16 %v103
    %v380 = vunpack.c.l.b16 %v104
    %v381 = vunpack.c.h.b16 %v104
    %v382 = vunpack.c.l.b16 %v105
    %v383 = vunpack.c.h.b16 %v105
    %v384 = vunpack.c.l.b16 %v106
    %v385 = vunpack.c.h.b16 %v106
    %v386 = vunpack.c.l.b16 %v107
    %v387 = vunpack.c.h.b16 %v107
    %v388 = vunpack.c.l.b16 %v108
    %v389 = vunpack.c.h.b16 %v108
    %v390 = vunpack.c.l.b16 %v109
    %v391 = vunpack.c.h.b16 %v109
    %v392 = vunpack.c.l.b16 %v110
    %v393 = vunpack.c.h.b16 %v110
    %v394 = vunpack.c.l.b16 %v111
    %v395 = vunpack.c.h.b16 %v111
    %v396 = vunpack.c.l.b16 %v112
    %v397 = vunpack.c.h.b16 %v112
    %v398 = vunpack.c.l.b16 %v113
    %v399 = vunpack.c.h.b16 %v113
    %v400 = vunpack.c.l.b16 %v114
    %v401 = vunpack.c.h.b16 %v114
    %v402 = vunpack.c.l.b16 %v115
    %v403 = vunpack.c.h.b16 %v115
    %v404 = vunpack.c.l.b16 %v116
    %v405 = vunpack.c.h.b16 %v116
    %v406 = vunpack.c.l.b16 %v117
    %v407 = vunpack.c.h.b16 %v117
    %v408 = vunpack.c.l.b16 %v118
    %v409 = vunpack.c.h.b16 %v118
    %v410 = vunpack.c.l.b16 %v119
    %v411 = vunpack.c.h.b16 %v119
    %v412 = vunpack.c.l.b16 %v120
    %v413 = vunpack.c.h.b16 %v120
    %v414 = vunpack.c.l.b16 %v121
    %v415 = vunpack.c.h.b16 %v121
    %v416 = vunpack.c.l.b16 %v122
    %v417 = vunpack.c.h.b16 %v122
    %v418 = vunpack.c.l.b16 %v123
    %v419 = vunpack.c.h.b16 %v123
    %v420 = vunpack.c.l.b16 %v124
    %v421 = vunpack.c.h.b16 %v124
    %v422 = vunpack.c.l.b16 %v125
    %v423 = vunpack.c.h.b16 %v125
    %v424 = vunpack.c.l.b16 %v126
    %v425 = vunpack.c.h.b16 %v126
    %v426 = vunpack.c.l.b16 %v127
    %v427 = vunpack.c.h.b16 %v127
    %v428 = vunpack.c.l.b16 %v128
    %v429 = vunpack.c.h.b16 %v128
    %v430 = vunpack.c.l.b16 %v129
    %v431 = vunpack.c.h.b16 %v129
    %v432 = vunpack.c.l.b16 %v130
    %v433 = vunpack.c.h.b16 %v130
    %v434 = vunpack.c.l.b16 %v131
    %v435 = vunpack.c.h.b16 %v131
    %v436 = vunpack.c.l.b16 %v132
    %v437 = vunpack.c.h.b16 %v132
    %v438 = vunpack.c.l.b16 %v133
    %v439 = vunpack.c.h.b16 %v133
    %v440 = vunpack.c.l.b16 %v134
    %v441 = vunpack.c.h.b16 %v134
    %v442 = vunpack.c.l.b16 %v135
    %v443 = vunpack.c.h.b16 %v135
    %v444 = vunpack.c.l.b16 %v136
    %v445 = vunpack.c.h.b16 %v136
    %v446 = vunpack.c.l.b16 %v137
    %v447 = vunpack.c.h.b16 %v137
    %v448 = vunpack.c.l.b16 %v138
    %v449 = vunpack.c.h.b16 %v138
    %v450 = vunpack.c.l.b16 %v139
    %v451 = vunpack.c.h.b16 %v139
    %v452 = vunpack.c.l.b16 %v140
    %v453 = vunpack.c.h.b16 %v140
    %v454 = vunpack.c.l.b16 %v141
    %v455 = vunpack.c.h.b16 %v141
    %v456 = vunpack.c.l.b16 %v142
    %v457 = vunpack.c.h.b16 %v142
    %v458 = vunpack.c.l.b16 %v143
    %v459 = vunpack.c.h.b16 %v143
    %v460 = vunpack.c.l.b16 %v144
    %v461 = vunpack.c.h.b16 %v144
    %v462 = vunpack.c.l.b16 %v145
    %v463 = vunpack.c.h.b16 %v145
    %v464 = vunpack.c.l.b16 %v146
    %v465 = vunpack.c.h.b16 %v146
    %v466 = vunpack.c.l.b16 %v147
    %v467 = vunpack.c.h.b16 %v147
    %v468 = vunpack.c.l.b16 %v148
    %v469 = vunpack.c.h.b16 %v148
    %v470 = vunpack.c.l.b16 %v149
    %v471 = vunpack.c.h.b16 %v149
    %v472 = vunpack.c.l.b16 %v150
    %v473 = vunpack.c.h.b16 %v150
    %v474 = vunpack.c.l.b16 %v151
    %v475 = vunpack.c.h.b16 %v151
    %v476 = vunpack.c.l.b16 %v152
    %v477 = vunpack.c.h.b16 %v152
    %v478 = vunpack.c.l.b16 %v153
    %v479 = vunpack.c.h.b16 %v153
    %v480 = vunpack.c.l.b16 %v154
    %v481 = vunpack.c.h.b16 %v154
    %v482 = vunpack.c.l.b16 %v155
    %v483 = vunpack.c.h.b16 %v155
    %v484 = vunpack.c.l.b16 %v156
    %v485 = vunpack.c.h.b16 %v156
    %v486 = vunpack.c.l.b16 %v157
    %v487 = vunpack.c.h.b16 %v157
    %v488 = vunpack.c.l.b16 %v158
    %v489 = vunpack.c.h.b16 %v158
    %v490 = vunpack.c.l.b16 %v159
    %v491 = vunpack.c.h.b16 %v159
    %v492 = vunpack.c.l.b16 %v160
    %v493 = vunpack.c.h.b16 %v160
    %v494 = vunpack.c.l.b16 %v161
    %v495 = vunpack.c.h.b16 %v161
    %v496 = vunpack.c.l.b16 %v162
    %v497 = vunpack.c.h.b16 %v162
    %v498 = vunpack.c.l.b16 %v163
    %v499 = vunpack.c.h.b16 %v163
    %v500 = vunpack.c.l.b16 %v164
    %v501 = vunpack.c.h.b16 %v164
    %v502 = vunpack.c.l.b16 %v165
    %v503 = vunpack.c.h.b16 %v165
    %v504 = vunpack.c.l.b16 %v166
    %v505 = vunpack.c.h.b16 %v166
    %v506 = vunpack.c.l.b16 %v167
    %v507 = vunpack.c.h.b16 %v167
    %v508 = vunpack.c.l.b16 %v168
    %v509 = vunpack.c.h.b16 %v168
    %v510 = vunpack.c.l.b16 %v169
    %v511 = vunpack.c.h.b16 %v169
    %v512 = vunpack.c.l.b16 %v170
    %v513 = vunpack.c.h.b16 %v170
    %v514 = vunpack.c.l.b16 %v171
    %v515 = vunpack.c.h.b16 %v171
    %v516 = vunpack.c.l.b16 %v172
    %v517 = vunpack.c.h.b16 %v172
    %v518 = vunpack.c.l.b16 %v173
    %v519 = vunpack.c.h.b16 %v173
    %v520 = vunpack.c.l.b16 %v174
    %v521 = vunpack.c.h.b16 %v174
    %v522 = vunpack.c.l.b16 %v175
    %v523 = vunpack.c.h.b16 %v175
    %v524 = vunpack.c.l.b16 %v176
    %v525 = vunpack.c.h.b16 %v176
    %v526 = vunpack.c.l.b16 %v177
    %v527 = vunpack.c.h.b16 %v177
    %v528 = vunpack.c.l.b16 %v178
    %v529 = vunpack.c.h.b16 %v178
    %v530 = vunpack.c.l.b16 %v179
    %v531 = vunpack.c.h.b16 %v179
    %v532 = vunpack.c.l.b16 %v180
    %v533 = vunpack.c.h.b16 %v180
    %v534 = vunpack.c.l.b16 %v181
    %v535 = vunpack.c.h.b16 %v181
    %v536 = vunpack.c.l.b16 %v182
    %v537 = vunpack.c.h.b16 %v182
    %v538 = vunpack.c.l.b16 %v183
    %v539 = vunpack.c.h.b16 %v183
    %v540 = vunpack.c.l.b16 %v184
    %v541 = vunpack.c.h.b16 %v184
    %v542 = vunpack.c.l.b16 %v185
    %v543 = vunpack.c.h.b16 %v185
    %v544 = vunpack.c.l.b16 %v186
    %v545 = vunpack.c.h.b16 %v186
    %v546 = vunpack.c.l.b16 %v187
    %v547 = vunpack.c.h.b16 %v187
    %v548 = vunpack.c.l.b16 %v188
    %v549 = vunpack.c.h.b16 %v188
    %v550 = vunpack.c.l.b16 %v189
    %v551 = vunpack.c.h.b16 %v189
    %v552 = vunpack.c.l.b16 %v190
    %v553 = vunpack.c.h.b16 %v190
    %v554 = vunpack.c.l.b16 %v191
    %v555 = vunpack.c.h.b16 %v191
    %v556 = vunpack.c.l.b16 %v192
    %v557 = vunpack.c.h.b16 %v192
    %v558 = vunpack.c.l.b16 %v193
    %v559 = vunpack.c.h.b16 %v193
    %v560 = vunpack.c.l.b16 %v194
    %v561 = vunpack.c.h.b16 %v194
    %v562 = vunpack.c.l.b16 %v195
    %v563 = vunpack.c.h.b16 %v195
    %v564 = vunpack.c.l.b16 %v196
    %v565 = vunpack.c.h.b16 %v196
    %v566 = vunpack.c.l.b16 %v197
    %v567 = vunpack.c.h.b16 %v197
    %v568 = vunpack.c.l.b16 %v198
    %v569 = vunpack.c.h.b16 %v198
    %v570 = vunpack.c.l.b16 %v199
    %v571 = vunpack.c.h.b16 %v199
    %v572 = vunpack.c.l.b16 %v200
    %v573 = vunpack.c.h.b16 %v200
    %v574 = vunpack.c.l.b16 %v201
    %v575 = vunpack.c.h.b16 %v201
    %v576 = vunpack.c.l.b16 %v202
    %v577 = vunpack.c.h.b16 %v202
    %v578 = vunpack.c.l.b16 %v203
    %v579 = vunpack.c.h.b16 %v203
    %v580 = vunpack.c.l.b16 %v204
    %v581 = vunpack.c.h.b16 %v204
    %v582 = vunpack.c.l.b16 %v205
    %v583 = vunpack.c.h.b16 %v205
    %v584 = vunpack.c.l.b16 %v206
    %v585 = vunpack.c.h.b16 %v206
    %v586 = vunpack.c.l.b16 %v207
    %v587 = vunpack.c.h.b16 %v207
    %v588 = vunpack.c.l.b16 %v208
    %v589 = vunpack.c.h.b16 %v208
    %v590 = vunpack.c.l.b16 %v209
    %v591 = vunpack.c.h.b16 %v209
    %v592 = vunpack.c.l.b16 %v210
    %v593 = vunpack.c.h.b16 %v210
    %v594 = vunpack.c.l.b16 %v211
    %v595 = vunpack.c.h.b16 %v211
    %v596 = vunpack.c.l.b16 %v212
    %v597 = vunpack.c.h.b16 %v212
    %v598 = vunpack.c.l.b16 %v213
    %v599 = vunpack.c.h.b16 %v213
    %v600 = vunpack.c.l.b16 %v214
    %v601 = vunpack.c.h.b16 %v214
    %v602 = vunpack.c.l.b16 %v215
    %v603 = vunpack.c.h.b16 %v215
    %v604 = vunpack.c.l.b16 %v216
    %v605 = vunpack.c.h.b16 %v216
    %v606 = vunpack.c.l.b16 %v217
    %v607 = vunpack.c.h.b16 %v217
    %v608 = vunpack.c.l.b16 %v218
    %v609 = vunpack.c.h.b16 %v218
    %v610 = vunpack.c.l.b16 %v219
    %v611 = vunpack.c.h.b16 %v219
    %v612 = vunpack.c.l.b16 %v220
    %v613 = vunpack.c.h.b16 %v220
    %v614 = vunpack.c.l.b16 %v221
    %v615 = vunpack.c.h.b16 %v221
    %v616 = vunpack.c.l.b16 %v222
    %v617 = vunpack.c.h.b16 %v222
    %v618 = vunpack.c.l.b16 %v223
    %v619 = vunpack.c.h.b16 %v223
    %v620 = vunpack.c.l.b16 %v224
    %v621 = vunpack.c.h.b16 %v224
    %v622 = vunpack.c.l.b16 %v225
    %v623 = vunpack.c.h.b16 %v225
    %v624 = vpack.c.b16 %v370, %v368
    %v625 = vpack.c.b16 %v371, %v369
    %v626 = vpack.c.b16 %v374, %v372
    %v627 = vpack.c.b16 %v375, %v373
    %v628 = vpack.c.b16 %v378, %v376
    %v629 = vpack.c.b16 %v379, %v377
    %v630 = vpack.c.b16 %v382, %v380
    %v631 = vpack.c.b16 %v383, %v381
    %v632 = vpack.c.b16 %v386, %v384
    %v633 = vpack.c.b16 %v387, %v385
    %v634 = vpack.c.b16 %v390, %v388
    %v635 = vpack.c.b16 %v391, %v389
    %v636 = vpack.c.b16 %v394, %v392
    %v637 = vpack.c.b16 %v395, %v393
    %v638 = vpack.c.b16 %v398, %v396
    %v639 = vpack.c.b16 %v399, %v397
    %v640 = vpack.c.b16 %v402, %v400
    %v641 = vpack.c.b16 %v403, %v401
    %v642 = vpack.c.b16 %v406, %v404
    %v643 = vpack.c.b16 %v407, %v405
    %v644 = vpack.c.b16 %v410, %v408
    %v645 = vpack.c.b16 %v411, %v409
    %v646 = vpack.c.b16 %v414, %v412
    %v647 = vpack.c.b16 %v415, %v413
    %v648 = vpack.c.b16 %v418, %v416
    %v649 = vpack.c.b16 %v419, %v417
    %v650 = vpack.c.b16 %v422, %v420
    %v651 = vpack.c.b16 %v423, %v421
    %v652 = vpack.c.b16 %v426, %v424
    %v653 = vpack.c.b16 %v427, %v425
    %v654 = vpack.c.b16 %v430, %v428
    %v655 = vpack.c.b16 %v431, %v429
    %v656 = vpack.c.b16 %v434, %v432
    %v657 = vpack.c.b16 %v435, %v433
    %v658 = vpack.c.b16 %v438, %v436
    %v659 = vpack.c.b16 %v439, %v437
    %v660 = vpack.c.b16 %v442, %v440
    %v661 = vpack.c.b16 %v443, %v441
    %v662 = vpack.c.b16 %v446, %v444
    %v663 = vpack.c.b16 %v447, %v445
    %v664 = vpack.c.b16 %v450, %v448
    %v665 = vpack.c.b16 %v451, %v449
    %v666 = vpack.c.b16 %v454, %v452
    %v667 = vpack.c.b16 %v455, %v453
    %v668 = vpack.c.b16 %v458, %v456
    %v669 = vpack.c.b16 %v459, %v457
    %v670 = vpack.c.b16 %v462, %v460
    %v671 = vpack.c.b16 %v463, %v461
    %v672 = vpack.c.b16 %v466, %v464
    %v673 = vpack.c.b16 %v467, %v465
    %v674 = vpack.c.b16 %v470, %v468
    %v675 = vpack.c.b16 %v471, %v469
    %v676 = vpack.c.b16 %v474, %v472
    %v677 = vpack.c.b16 %v475, %v473
    %v678 = vpack.c.b16 %v478, %v476
    %v679 = vpack.c.b16 %v479, %v477
    %v680 = vpack.c.b16 %v482, %v480
    %v681 = vpack.c.b16 %v483, %v481
    %v682 = vpack.c.b16 %v486, %v484
    %v683 = vpack.c.b16 %v487, %v485
    %v684 = vpack.c.b16 %v490, %v488
    %v685 = vpack.c.b16 %v491, %v489
    %v686 = vpack.c.b16 %v494, %v492
    %v687 = vpack.c.b16 %v495, %v493
    %v688 = vpack.c.b16 %v498, %v496
    %v689 = vpack.c.b16 %v499, %v497
    %v690 = vpack.c.b16 %v502, %v500
    %v691 = vpack.c.b16 %v503, %v501
    %v692 = vpack.c.b16 %v506, %v504
    %v693 = vpack.c.b16 %v507, %v505
    %v694 = vpack.c.b16 %v510, %v508
    %v695 = vpack.c.b16 %v511, %v509
    %v696 = vpack.c.b16 %v514, %v512
    %v697 = vpack.c.b16 %v515, %v513
    %v698 = vpack.c.b16 %v518, %v516
    %v699 = vpack.c.b16 %v519, %v517
    %v700 = vpack.c.b16 %v522, %v520
    %v701 = vpack.c.b16 %v523, %v521
    %v702 = vpack.c.b16 %v526, %v524
    %v703 = vpack.c.b16 %v527, %v525
    %v704 = vpack.c.b16 %v530, %v528
    %v705 = vpack.c.b16 %v531, %v529
    %v706 = vpack.c.b16 %v534, %v532
    %v707 = vpack.c.b16 %v535, %v533
    %v708 = vpack.c.b16 %v538, %v536
    %v709 = vpack.c.b16 %v539, %v537
    %v710 = vpack.c.b16 %v542, %v540
    %v711 = vpack.c.b16 %v543, %v541
    %v712 = vpack.c.b16 %v546, %v544
    %v713 = vpack.c.b16 %v547, %v545
    %v714 = vpack.c.b16 %v550, %v548
    %v715 = vpack.c.b16 %v551, %v549
    %v716 = vpack.c.b16 %v554, %v552
    %v717 = vpack.c.b16 %v555, %v553
    %v718 = vpack.c.b16 %v558, %v556
    %v719 = vpack.c.b16 %v559, %v557
    %v720 = vpack.c.b16 %v562, %v560
    %v721 = vpack.c.b16 %v563, %v561
    %v722 = vpack.c.b16 %v566, %v564
    %v723 = vpack.c.b16 %v567, %v565
    %v724 = vpack.c.b16 %v570, %v568
    %v725 = vpack.c.b16 %v571, %v569
    %v726 = vpack.c.b16 %v574, %v572
    %v727 = vpack.c.b16 %v575, %v573
    %v728 = vpack.c.b16 %v578, %v576
    %v729 = vpack.c.b16 %v579, %v577
    %v730 = vpack.c.b16 %v582, %v580
    %v731 = vpack.c.b16 %v583, %v581
    %v732 = vpack.c.b16 %v586, %v584
    %v733 = vpack.c.b16 %v587, %v585
    %v734 = vpack.c.b16 %v590, %v588
    %v735 = vpack.c.b16 %v591, %v589
    %v736 = vpack.c.b16 %v594, %v592
    %v737 = vpack.c.b16 %v595, %v593
    %v738 = vpack.c.b16 %v598, %v596
    %v739 = vpack.c.b16 %v599, %v597
    %v740 = vpack.c.b16 %v602, %v600
    %v741 = vpack.c.b16 %v603, %v601
    %v742 = vpack.c.b16 %v606, %v604
    %v743 = vpack.c.b16 %v607, %v605
    %v744 = vpack.c.b16 %v610, %v608
    %v745 = vpack.c.b16 %v611, %v609
    %v746 = vpack.c.b16 %v614, %v612
    %v747 = vpack.c.b16 %v615, %v613
    %v748 = vpack.c.b16 %v618, %v616
    %v749 = vpack.c.b16 %v619, %v617
    %v750 = vpack.c.b16 %v622, %v620
    %v751 = vpack.c.b16 %v623, %v621
    %880 = vmatpush.bf16.msra.mxu0 %v638
    %881 = vmatpush.bf16.msra.mxu0 %v636
    %882 = vmatpush.bf16.msra.mxu0 %v634
    %883 = vmatpush.bf16.msra.mxu0 %v632
    %884 = vmatpush.bf16.msra.mxu0 %v630
    %885 = vmatpush.bf16.msra.mxu0 %v628
    %886 = vmatpush.bf16.msra.mxu0 %v626
    %887 = vmatpush.bf16.msra.mxu0 %v624
    %888 = vmatmul.bf16.gmra.mxu0 %v227
    %v889 = vpop.f32.mrf.mxu0
    %v890 = vadd.f32 %v236, %v889
    %v891 = vpop.f32.mrf.mxu0
    %892 = vdwg.mxu0
    %893 = vmatpush.bf16.msra.mxu0 %v654
    %894 = vmatpush.bf16.msra.mxu0 %v652
    %895 = vmatpush.bf16.msra.mxu0 %v650
    %896 = vmatpush.bf16.msra.mxu0 %v648
    %897 = vmatpush.bf16.msra.mxu0 %v646
    %898 = vmatpush.bf16.msra.mxu0 %v644
    %899 = vmatpush.bf16.msra.mxu0 %v642
    %900 = vmatpush.bf16.msra.mxu0 %v640
    %901 = vmatmul.bf16.gmra.mxu0 %v228
    %v902 = vpop.f32.mrf.mxu0
    %v903 = vadd.f32 %v890, %v902
    %v904 = vpop.f32.mrf.mxu0
    %905 = vdwg.mxu0
    %906 = vmatpush.bf16.msra.mxu0 %v670
    %907 = vmatpush.bf16.msra.mxu0 %v668
    %908 = vmatpush.bf16.msra.mxu0 %v666
    %909 = vmatpush.bf16.msra.mxu0 %v664
    %910 = vmatpush.bf16.msra.mxu0 %v662
    %911 = vmatpush.bf16.msra.mxu0 %v660
    %912 = vmatpush.bf16.msra.mxu0 %v658
    %913 = vmatpush.bf16.msra.mxu0 %v656
    %914 = vmatmul.bf16.gmra.mxu0 %v229
    %v915 = vpop.f32.mrf.mxu0
    %v916 = vadd.f32 %v903, %v915
    %v917 = vpop.f32.mrf.mxu0
    %918 = vdwg.mxu0
    %919 = vmatpush.bf16.msra.mxu0 %v686
    %920 = vmatpush.bf16.msra.mxu0 %v684
    %921 = vmatpush.bf16.msra.mxu0 %v682
    %922 = vmatpush.bf16.msra.mxu0 %v680
    %923 = vmatpush.bf16.msra.mxu0 %v678
    %924 = vmatpush.bf16.msra.mxu0 %v676
    %925 = vmatpush.bf16.msra.mxu0 %v674
    %926 = vmatpush.bf16.msra.mxu0 %v672
    %927 = vmatmul.bf16.gmra.mxu0 %v230
    %v928 = vpop.f32.mrf.mxu0
    %v929 = vadd.f32 %v916, %v928
    %v930 = vpop.f32.mrf.mxu0
    %931 = vdwg.mxu0
    %932 = vmatpush.bf16.msra.mxu0 %v702
    %933 = vmatpush.bf16.msra.mxu0 %v700
    %934 = vmatpush.bf16.msra.mxu0 %v698
    %935 = vmatpush.bf16.msra.mxu0 %v696
    %936 = vmatpush.bf16.msra.mxu0 %v694
    %937 = vmatpush.bf16.msra.mxu0 %v692
    %938 = vmatpush.bf16.msra.mxu0 %v690
    %939 = vmatpush.bf16.msra.mxu0 %v688
    %940 = vmatmul.bf16.gmra.mxu0 %v231
    %v941 = vpop.f32.mrf.mxu0
    %v942 = vadd.f32 %v929, %v941
    %v943 = vpop.f32.mrf.mxu0
    %944 = vdwg.mxu0
    %945 = vmatpush.bf16.msra.mxu0 %v718
    %946 = vmatpush.bf16.msra.mxu0 %v716
    %947 = vmatpush.bf16.msra.mxu0 %v714
    %948 = vmatpush.bf16.msra.mxu0 %v712
    %949 = vmatpush.bf16.msra.mxu0 %v710
    %950 = vmatpush.bf16.msra.mxu0 %v708
    %951 = vmatpush.bf16.msra.mxu0 %v706
    %952 = vmatpush.bf16.msra.mxu0 %v704
    %953 = vmatmul.bf16.gmra.mxu0 %v232
    %v954 = vpop.f32.mrf.mxu0
    %v955 = vadd.f32 %v942, %v954
    %v956 = vpop.f32.mrf.mxu0
    %957 = vdwg.mxu0
    %958 = vmatpush.bf16.msra.mxu0 %v734
    %959 = vmatpush.bf16.msra.mxu0 %v732
    %960 = vmatpush.bf16.msra.mxu0 %v730
    %961 = vmatpush.bf16.msra.mxu0 %v728
    %962 = vmatpush.bf16.msra.mxu0 %v726
    %963 = vmatpush.bf16.msra.mxu0 %v724
    %964 = vmatpush.bf16.msra.mxu0 %v722
    %965 = vmatpush.bf16.msra.mxu0 %v720
    %966 = vmatmul.bf16.gmra.mxu0 %v233
    %v967 = vpop.f32.mrf.mxu0
    %v968 = vadd.f32 %v955, %v967
    %v969 = vpop.f32.mrf.mxu0
    %970 = vdwg.mxu0
    %971 = vmatpush.bf16.msra.mxu0 %v750
    %972 = vmatpush.bf16.msra.mxu0 %v748
    %973 = vmatpush.bf16.msra.mxu0 %v746
    %974 = vmatpush.bf16.msra.mxu0 %v744
    %975 = vmatpush.bf16.msra.mxu0 %v742
    %976 = vmatpush.bf16.msra.mxu0 %v740
    %977 = vmatpush.bf16.msra.mxu0 %v738
    %978 = vmatpush.bf16.msra.mxu0 %v736
    %979 = vmatmul.bf16.gmra.mxu0 %v234
    %v980 = vpop.f32.mrf.mxu0
    %v981 = vadd.f32 %v968, %v980
    %v982 = vpop.f32.mrf.mxu0
    %983 = vdwg.mxu0
    %984 = vmatpush.bf16.msra.mxu0 %v639
    %985 = vmatpush.bf16.msra.mxu0 %v637
    %986 = vmatpush.bf16.msra.mxu0 %v635
    %987 = vmatpush.bf16.msra.mxu0 %v633
    %988 = vmatpush.bf16.msra.mxu0 %v631
    %989 = vmatpush.bf16.msra.mxu0 %v629
    %990 = vmatpush.bf16.msra.mxu0 %v627
    %991 = vmatpush.bf16.msra.mxu0 %v625
    %992 = vmatmul.bf16.gmra.mxu0 %v227
    %v993 = vpop.f32.mrf.mxu0
    %v994 = vadd.f32 %v237, %v993
    %v995 = vpop.f32.mrf.mxu0
    %996 = vdwg.mxu0
    %997 = vmatpush.bf16.msra.mxu0 %v655
    %998 = vmatpush.bf16.msra.mxu0 %v653
    %999 = vmatpush.bf16.msra.mxu0 %v651
    %1000 = vmatpush.bf16.msra.mxu0 %v649
    %1001 = vmatpush.bf16.msra.mxu0 %v647
    %1002 = vmatpush.bf16.msra.mxu0 %v645
    %1003 = vmatpush.bf16.msra.mxu0 %v643
    %1004 = vmatpush.bf16.msra.mxu0 %v641
    %1005 = vmatmul.bf16.gmra.mxu0 %v228
    %v1006 = vpop.f32.mrf.mxu0
    %v1007 = vadd.f32 %v994, %v1006
    %v1008 = vpop.f32.mrf.mxu0
    %1009 = vdwg.mxu0
    %1010 = vmatpush.bf16.msra.mxu0 %v671
    %1011 = vmatpush.bf16.msra.mxu0 %v669
    %1012 = vmatpush.bf16.msra.mxu0 %v667
    %1013 = vmatpush.bf16.msra.mxu0 %v665
    %1014 = vmatpush.bf16.msra.mxu0 %v663
    %1015 = vmatpush.bf16.msra.mxu0 %v661
    %1016 = vmatpush.bf16.msra.mxu0 %v659
    %1017 = vmatpush.bf16.msra.mxu0 %v657
    %1018 = vmatmul.bf16.gmra.mxu0 %v229
    %v1019 = vpop.f32.mrf.mxu0
    %v1020 = vadd.f32 %v1007, %v1019
    %v1021 = vpop.f32.mrf.mxu0
    %1022 = vdwg.mxu0
    %1023 = vmatpush.bf16.msra.mxu0 %v687
    %1024 = vmatpush.bf16.msra.mxu0 %v685
    %1025 = vmatpush.bf16.msra.mxu0 %v683
    %1026 = vmatpush.bf16.msra.mxu0 %v681
    %1027 = vmatpush.bf16.msra.mxu0 %v679
    %1028 = vmatpush.bf16.msra.mxu0 %v677
    %1029 = vmatpush.bf16.msra.mxu0 %v675
    %1030 = vmatpush.bf16.msra.mxu0 %v673
    %1031 = vmatmul.bf16.gmra.mxu0 %v230
    %v1032 = vpop.f32.mrf.mxu0
    %v1033 = vadd.f32 %v1020, %v1032
    %v1034 = vpop.f32.mrf.mxu0
    %1035 = vdwg.mxu0
    %1036 = vmatpush.bf16.msra.mxu0 %v703
    %1037 = vmatpush.bf16.msra.mxu0 %v701
    %1038 = vmatpush.bf16.msra.mxu0 %v699
    %1039 = vmatpush.bf16.msra.mxu0 %v697
    %1040 = vmatpush.bf16.msra.mxu0 %v695
    %1041 = vmatpush.bf16.msra.mxu0 %v693
    %1042 = vmatpush.bf16.msra.mxu0 %v691
    %1043 = vmatpush.bf16.msra.mxu0 %v689
    %1044 = vmatmul.bf16.gmra.mxu0 %v231
    %v1045 = vpop.f32.mrf.mxu0
    %v1046 = vadd.f32 %v1033, %v1045
    %v1047 = vpop.f32.mrf.mxu0
    %1048 = vdwg.mxu0
    %1049 = vmatpush.bf16.msra.mxu0 %v719
    %1050 = vmatpush.bf16.msra.mxu0 %v717
    %1051 = vmatpush.bf16.msra.mxu0 %v715
    %1052 = vmatpush.bf16.msra.mxu0 %v713
    %1053 = vmatpush.bf16.msra.mxu0 %v711
    %1054 = vmatpush.bf16.msra.mxu0 %v709
    %1055 = vmatpush.bf16.msra.mxu0 %v707
    %1056 = vmatpush.bf16.msra.mxu0 %v705
    %1057 = vmatmul.bf16.gmra.mxu0 %v232
    %v1058 = vpop.f32.mrf.mxu0
    %v1059 = vadd.f32 %v1046, %v1058
    %v1060 = vpop.f32.mrf.mxu0
    %1061 = vdwg.mxu0
    %1062 = vmatpush.bf16.msra.mxu0 %v735
    %1063 = vmatpush.bf16.msra.mxu0 %v733
    %1064 = vmatpush.bf16.msra.mxu0 %v731
    %1065 = vmatpush.bf16.msra.mxu0 %v729
    %1066 = vmatpush.bf16.msra.mxu0 %v727
    %1067 = vmatpush.bf16.msra.mxu0 %v725
    %1068 = vmatpush.bf16.msra.mxu0 %v723
    %1069 = vmatpush.bf16.msra.mxu0 %v721
    %1070 = vmatmul.bf16.gmra.mxu0 %v233
    %v1071 = vpop.f32.mrf.mxu0
    %v1072 = vadd.f32 %v1059, %v1071
    %v1073 = vpop.f32.mrf.mxu0
    %1074 = vdwg.mxu0
    %1075 = vmatpush.bf16.msra.mxu0 %v751
    %1076 = vmatpush.bf16.msra.mxu0 %v749
    %1077 = vmatpush.bf16.msra.mxu0 %v747
    %1078 = vmatpush.bf16.msra.mxu0 %v745
    %1079 = vmatpush.bf16.msra.mxu0 %v743
    %1080 = vmatpush.bf16.msra.mxu0 %v741
    %1081 = vmatpush.bf16.msra.mxu0 %v739
    %1082 = vmatpush.bf16.msra.mxu0 %v737
    %1083 = vmatmul.bf16.gmra.mxu0 %v234
    %v1084 = vpop.f32.mrf.mxu0
    %v1085 = vadd.f32 %v1072, %v1084
    %v1086 = vpop.f32.mrf.mxu0
    %1087 = vdwg.mxu0
    %vm1088 = vcmp.ge.f32.partialorder %v981, 0.0
    %vm1089 = vcmp.ge.f32.partialorder %v1085, 0.0
    %v1090 = vmul.f32 %v981, 0.01
    %v1091 = vmul.f32 %v1085, 0.01
    %v1092 = vsel %vm1088, %v981, %v1090
    %v1093 = vsel %vm1089, %v1085, %v1091
    %v1094 = vld [vmem:[%s3] sm:$0xf]
    %v1095 = vld [vmem:[%s3 + $0x4] sm:$0xf]
    %v1096 = vld [vmem:[%s3 + $0x8] sm:$0xf]
    %v1097 = vld [vmem:[%s3 + $0xc] sm:$0xf]
    %v1098 = vld [vmem:[%s3 + $0x10] sm:$0xf]
    %v1099 = vld [vmem:[%s3 + $0x14] sm:$0xf]
    %v1100 = vld [vmem:[%s3 + $0x18] sm:$0xf]
    %v1101 = vld [vmem:[%s3 + $0x1c] sm:$0xf]
    %v1102 = vld [vmem:[%s3 + $0x20] sm:$0xf]
    %v1103 = vld [vmem:[%s3 + $0x24] sm:$0xf]
    %v1104 = vld [vmem:[%s3 + $0x28] sm:$0xf]
    %v1105 = vld [vmem:[%s3 + $0x2c] sm:$0xf]
    %v1106 = vld [vmem:[%s3 + $0x30] sm:$0xf]
    %v1107 = vld [vmem:[%s3 + $0x34] sm:$0xf]
    %v1108 = vld [vmem:[%s3 + $0x38] sm:$0xf]
    %v1109 = vld [vmem:[%s3 + $0x3c] sm:$0xf]
    %v1110 = vld [vmem:[%s3 + $0x40] sm:$0xf]
    %v1111 = vld [vmem:[%s3 + $0x44] sm:$0xf]
    %v1112 = vld [vmem:[%s3 + $0x48] sm:$0xf]
    %v1113 = vld [vmem:[%s3 + $0x4c] sm:$0xf]
    %v1114 = vld [vmem:[%s3 + $0x50] sm:$0xf]
    %v1115 = vld [vmem:[%s3 + $0x54] sm:$0xf]
    %v1116 = vld [vmem:[%s3 + $0x58] sm:$0xf]
    %v1117 = vld [vmem:[%s3 + $0x5c] sm:$0xf]
    %v1118 = vld [vmem:[%s3 + $0x60] sm:$0xf]
    %v1119 = vld [vmem:[%s3 + $0x64] sm:$0xf]
    %v1120 = vld [vmem:[%s3 + $0x68] sm:$0xf]
    %v1121 = vld [vmem:[%s3 + $0x6c] sm:$0xf]
    %v1122 = vld [vmem:[%s3 + $0x70] sm:$0xf]
    %v1123 = vld [vmem:[%s3 + $0x74] sm:$0xf]
    %v1124 = vld [vmem:[%s3 + $0x78] sm:$0xf]
    %v1125 = vld [vmem:[%s3 + $0x7c] sm:$0xf]
    %v1126 = vld [vmem:[%s4] sm:$0x1]
    %v1127 = vpack.c.bf16 %v1092, %v1092
    %v1128 = vpack.c.bf16 %v1093, %v1093
    %v1130 = vperm.slane %v1126, 0
    %v1164 = vunpack.c.l.b16 %v1094
    %v1165 = vunpack.c.l.b16 %v1095
    %v1166 = vunpack.c.l.b16 %v1096
    %v1167 = vunpack.c.l.b16 %v1097
    %v1168 = vunpack.c.l.b16 %v1098
    %v1169 = vunpack.c.l.b16 %v1099
    %v1170 = vunpack.c.l.b16 %v1100
    %v1171 = vunpack.c.l.b16 %v1101
    %v1172 = vunpack.c.l.b16 %v1102
    %v1173 = vunpack.c.l.b16 %v1103
    %v1174 = vunpack.c.l.b16 %v1104
    %v1175 = vunpack.c.l.b16 %v1105
    %v1176 = vunpack.c.l.b16 %v1106
    %v1177 = vunpack.c.l.b16 %v1107
    %v1178 = vunpack.c.l.b16 %v1108
    %v1179 = vunpack.c.l.b16 %v1109
    %v1180 = vunpack.c.l.b16 %v1110
    %v1181 = vunpack.c.l.b16 %v1111
    %v1182 = vunpack.c.l.b16 %v1112
    %v1183 = vunpack.c.l.b16 %v1113
    %v1184 = vunpack.c.l.b16 %v1114
    %v1185 = vunpack.c.l.b16 %v1115
    %v1186 = vunpack.c.l.b16 %v1116
    %v1187 = vunpack.c.l.b16 %v1117
    %v1188 = vunpack.c.l.b16 %v1118
    %v1189 = vunpack.c.l.b16 %v1119
    %v1190 = vunpack.c.l.b16 %v1120
    %v1191 = vunpack.c.l.b16 %v1121
    %v1192 = vunpack.c.l.b16 %v1122
    %v1193 = vunpack.c.l.b16 %v1123
    %v1194 = vunpack.c.l.b16 %v1124
    %v1195 = vunpack.c.l.b16 %v1125
    %v1196 = vpack.c.b16 %v1165, %v1164
    %v1197 = vpack.c.b16 %v1167, %v1166
    %v1198 = vpack.c.b16 %v1169, %v1168
    %v1199 = vpack.c.b16 %v1171, %v1170
    %v1200 = vpack.c.b16 %v1173, %v1172
    %v1201 = vpack.c.b16 %v1175, %v1174
    %v1202 = vpack.c.b16 %v1177, %v1176
    %v1203 = vpack.c.b16 %v1179, %v1178
    %v1204 = vpack.c.b16 %v1181, %v1180
    %v1205 = vpack.c.b16 %v1183, %v1182
    %v1206 = vpack.c.b16 %v1185, %v1184
    %v1207 = vpack.c.b16 %v1187, %v1186
    %v1208 = vpack.c.b16 %v1189, %v1188
    %v1209 = vpack.c.b16 %v1191, %v1190
    %v1210 = vpack.c.b16 %v1193, %v1192
    %v1211 = vpack.c.b16 %v1195, %v1194
    %1228 = vmatpush.bf16.msra.mxu0 %v1203
    %1229 = vmatpush.bf16.msra.mxu0 %v1202
    %1230 = vmatpush.bf16.msra.mxu0 %v1201
    %1231 = vmatpush.bf16.msra.mxu0 %v1200
    %1232 = vmatpush.bf16.msra.mxu0 %v1199
    %1233 = vmatpush.bf16.msra.mxu0 %v1198
    %1234 = vmatpush.bf16.msra.mxu0 %v1197
    %1235 = vmatpush.bf16.msra.mxu0 %v1196
    %1236 = vmatmul.bf16.gmra.mxu0 %v1127
    %v1237 = vpop.f32.mrf.mxu0
    %v1238 = vadd.f32 %v1130, %v1237
    %v1239 = vpop.f32.mrf.mxu0
    %1240 = vdwg.mxu0
    %1241 = vmatpush.bf16.msra.mxu0 %v1211
    %1242 = vmatpush.bf16.msra.mxu0 %v1210
    %1243 = vmatpush.bf16.msra.mxu0 %v1209
    %1244 = vmatpush.bf16.msra.mxu0 %v1208
    %1245 = vmatpush.bf16.msra.mxu0 %v1207
    %1246 = vmatpush.bf16.msra.mxu0 %v1206
    %1247 = vmatpush.bf16.msra.mxu0 %v1205
    %1248 = vmatpush.bf16.msra.mxu0 %v1204
    %1249 = vmatmul.bf16.gmra.mxu0 %v1128
    %v1250 = vpop.f32.mrf.mxu0
    %v1251 = vadd.f32 %v1238, %v1250
    %v1252 = vpop.f32.mrf.mxu0
    %1253 = vdwg.mxu0
    %vm1254 = vcmp.ge.f32.partialorder %v1251, 0.0
    %v1255 = vmul.f32 %v1251, 0.01
    %v1256 = vsel %vm1254, %v1251, %v1255
    %v1257 = vld [vmem:[%s5] sm:$0xf]
    %v1258 = vld [vmem:[%s5 + $0x4] sm:$0xf]
    %v1259 = vld [vmem:[%s5 + $0x8] sm:$0xf]
    %v1260 = vld [vmem:[%s5 + $0xc] sm:$0xf]
    %v1261 = vld [vmem:[%s5 + $0x10] sm:$0xf]
    %v1262 = vld [vmem:[%s5 + $0x14] sm:$0xf]
    %v1263 = vld [vmem:[%s5 + $0x18] sm:$0xf]
    %v1264 = vld [vmem:[%s5 + $0x1c] sm:$0xf]
    %v1265 = vld [vmem:[%s6] sm:$0x1]
    %v1266 = vpack.c.bf16 %v1256, %v1256
    %v1268 = vperm.slane %v1265, 0
    %v1278 = vunpack.c.l.b16 %v1257
    %v1279 = vunpack.c.l.b16 %v1258
    %v1280 = vunpack.c.l.b16 %v1259
    %v1281 = vunpack.c.l.b16 %v1260
    %v1282 = vunpack.c.l.b16 %v1261
    %v1283 = vunpack.c.l.b16 %v1262
    %v1284 = vunpack.c.l.b16 %v1263
    %v1285 = vunpack.c.l.b16 %v1264
    %v1286 = vpack.c.b16 %v1279, %v1278
    %v1287 = vpack.c.b16 %v1281, %v1280
    %v1288 = vpack.c.b16 %v1283, %v1282
    %v1289 = vpack.c.b16 %v1285, %v1284
    %vm1294 = vcmask 523264
    %v1296 = vsel %vm1294, %v1266, 0
    %1298 = vmatpush.bf16.msra.mxu0 0
    %1299 = vmatpush.bf16.msra.mxu0 0
    %1300 = vmatpush.bf16.msra.mxu0 0
    %1301 = vmatpush.bf16.msra.mxu0 0
    %1302 = vmatpush.bf16.msra.mxu0 %v1289
    %1303 = vmatpush.bf16.msra.mxu0 %v1288
    %1304 = vmatpush.bf16.msra.mxu0 %v1287
    %1305 = vmatpush.bf16.msra.mxu0 %v1286
    %1306 = vmatmul.bf16.gmra.mxu0 %v1296
    %v1307 = vpop.f32.mrf.mxu0
    %v1308 = vadd.f32 %v1268, %v1307
    %v1309 = vpop.f32.mrf.mxu0
    %1310 = vdwg.mxu0
    %vm1311 = vcmp.ge.f32.partialorder %v1308, 0.0
    %v1312 = vmul.f32 %v1308, 0.01
    %v1313 = vsel %vm1311, %v1308, %v1312
    %v1314 = vld [vmem:[%s7] sm:$0xf]
    %v1315 = vld [vmem:[%s7 + $0x4] sm:$0xf]
    %v1316 = vld [vmem:[%s8] sm:$0x1]
    %v1317 = vpack.c.bf16 %v1313, %v1313
    %v1319 = vperm.slane %v1316, 0
    %v1323 = vunpack.c.l.b16 %v1314
    %v1324 = vunpack.c.l.b16 %v1315
    %v1325 = vpack.c.b16 %v1324, %v1323
    %vm1327 = vcmask 130048
    %v1329 = vsel %vm1327, %v1317, 0
    %1331 = vmatpush.bf16.msra.mxu0 0
    %1332 = vmatpush.bf16.msra.mxu0 0
    %1333 = vmatpush.bf16.msra.mxu0 0
    %1334 = vmatpush.bf16.msra.mxu0 0
    %1335 = vmatpush.bf16.msra.mxu0 0
    %1336 = vmatpush.bf16.msra.mxu0 0
    %1337 = vmatpush.bf16.msra.mxu0 0
    %1338 = vmatpush.bf16.msra.mxu0 %v1325
    %1339 = vmatmul.bf16.gmra.mxu0 %v1329
    %v1340 = vpop.f32.mrf.mxu0
    %v1341 = vadd.f32 %v1319, %v1340
    %v1342 = vpop.f32.mrf.mxu0
    %1343 = vdwg.mxu0
    %v1344 = vld [vmem:[%s9] sm:$0x3]
    %v1345 = vld [vmem:[%s10] sm:$0x1]
    %v1346 = vpack.c.bf16 %v1341, %v1341
    %v1348 = vperm.slane %v1345, 0
    %vm1350 = vcmask 31744
    %v1352 = vsel %vm1350, %v1346, 0
    %vm1354 = vcmask 1041408
    %v1356 = vsel %vm1354, %v1344, 0
    %1358 = vmatpush.bf16.msra.mxu0 0
    %1359 = vmatpush.bf16.msra.mxu0 0
    %1360 = vmatpush.bf16.msra.mxu0 0
    %1361 = vmatpush.bf16.msra.mxu0 0
    %1362 = vmatpush.bf16.msra.mxu0 0
    %1363 = vmatpush.bf16.msra.mxu0 0
    %1364 = vmatpush.bf16.msra.mxu0 0
    %1365 = vmatpush.bf16.msra.mxu0 %v1356
    %1366 = vmatmul.bf16.gmra.mxu0 %v1352
    %v1367 = vpop.f32.mrf.mxu0
    %v1368 = vadd.f32 %v1348, %v1367
    %v1369 = vpop.f32.mrf.mxu0
    %1370 = vdwg.mxu0
    %vm1371 = vcmp.ge.f32.partialorder %v1368, 0.0
    %v1372 = vmul.f32 %v1368, 0.01
    %v1373 = vsel %vm1371, %v1368, %v1372
    %v1374 = vld [vmem:[%s11] sm:$0xf]
    %v1375 = vld [vmem:[%s11 + $0x4] sm:$0xf]
    %v1376 = vld [vmem:[%s12] sm:$0x1]
    %v1377 = vpack.c.bf16 %v1373, %v1373
    %v1379 = vperm.slane %v1376, 0
    %v1383 = vunpack.c.l.b16 %v1374
    %v1384 = vunpack.c.l.b16 %v1375
    %v1385 = vpack.c.b16 %v1384, %v1383
    %v1388 = vsel %vm1327, %v1377, 0
    %1390 = vmatpush.bf16.msra.mxu0 0
    %1391 = vmatpush.bf16.msra.mxu0 0
    %1392 = vmatpush.bf16.msra.mxu0 0
    %1393 = vmatpush.bf16.msra.mxu0 0
    %1394 = vmatpush.bf16.msra.mxu0 0
    %1395 = vmatpush.bf16.msra.mxu0 0
    %1396 = vmatpush.bf16.msra.mxu0 0
    %1397 = vmatpush.bf16.msra.mxu0 %v1385
    %1398 = vmatmul.bf16.gmra.mxu0 %v1388
    %v1399 = vpop.f32.mrf.mxu0
    %v1400 = vadd.f32 %v1379, %v1399
    %v1401 = vpop.f32.mrf.mxu0
    %1402 = vdwg.mxu0
    %vm1403 = vcmp.ge.f32.partialorder %v1400, 0.0
    %v1404 = vmul.f32 %v1400, 0.01
    %v1405 = vsel %vm1403, %v1400, %v1404
    %v1406 = vld [vmem:[%s13] sm:$0xff]
    %v1407 = vld [vmem:[%s13 + $0x8] sm:$0xff]
    %v1408 = vld [vmem:[%s13 + $0x10] sm:$0xff]
    %v1409 = vld [vmem:[%s13 + $0x18] sm:$0xff]
    %v1410 = vld [vmem:[%s13 + $0x20] sm:$0xff]
    %v1411 = vld [vmem:[%s13 + $0x28] sm:$0xff]
    %v1412 = vld [vmem:[%s13 + $0x30] sm:$0xff]
    %v1413 = vld [vmem:[%s13 + $0x38] sm:$0xff]
    %v1414 = vld [vmem:[%s14] sm:$0x3]
    %v1415 = vpack.c.bf16 %v1405, %v1405
    %v1417 = vperm.slane %v1414, 0
    %v1418 = vperm.slane %v1414, 1
    %v1429 = vunpack.c.l.b16 %v1406
    %v1430 = vunpack.c.h.b16 %v1406
    %v1431 = vunpack.c.l.b16 %v1407
    %v1432 = vunpack.c.h.b16 %v1407
    %v1433 = vunpack.c.l.b16 %v1408
    %v1434 = vunpack.c.h.b16 %v1408
    %v1435 = vunpack.c.l.b16 %v1409
    %v1436 = vunpack.c.h.b16 %v1409
    %v1437 = vunpack.c.l.b16 %v1410
    %v1438 = vunpack.c.h.b16 %v1410
    %v1439 = vunpack.c.l.b16 %v1411
    %v1440 = vunpack.c.h.b16 %v1411
    %v1441 = vunpack.c.l.b16 %v1412
    %v1442 = vunpack.c.h.b16 %v1412
    %v1443 = vunpack.c.l.b16 %v1413
    %v1444 = vunpack.c.h.b16 %v1413
    %v1445 = vpack.c.b16 %v1431, %v1429
    %v1446 = vpack.c.b16 %v1432, %v1430
    %v1447 = vpack.c.b16 %v1435, %v1433
    %v1448 = vpack.c.b16 %v1436, %v1434
    %v1449 = vpack.c.b16 %v1439, %v1437
    %v1450 = vpack.c.b16 %v1440, %v1438
    %v1451 = vpack.c.b16 %v1443, %v1441
    %v1452 = vpack.c.b16 %v1444, %v1442
    %v1462 = vsel %vm1294, %v1415, 0
    %1464 = vmatpush.bf16.msra.mxu0 0
    %1465 = vmatpush.bf16.msra.mxu0 0
    %1466 = vmatpush.bf16.msra.mxu0 0
    %1467 = vmatpush.bf16.msra.mxu0 0
    %1468 = vmatpush.bf16.msra.mxu0 %v1451
    %1469 = vmatpush.bf16.msra.mxu0 %v1449
    %1470 = vmatpush.bf16.msra.mxu0 %v1447
    %1471 = vmatpush.bf16.msra.mxu0 %v1445
    %1472 = vmatmul.bf16.gmra.mxu0 %v1462
    %v1473 = vpop.f32.mrf.mxu0
    %v1474 = vadd.f32 %v1417, %v1473
    %v1475 = vpop.f32.mrf.mxu0
    %1476 = vdwg.mxu0
    %1477 = vmatpush.bf16.msra.mxu0 0
    %1478 = vmatpush.bf16.msra.mxu0 0
    %1479 = vmatpush.bf16.msra.mxu0 0
    %1480 = vmatpush.bf16.msra.mxu0 0
    %1481 = vmatpush.bf16.msra.mxu0 %v1452
    %1482 = vmatpush.bf16.msra.mxu0 %v1450
    %1483 = vmatpush.bf16.msra.mxu0 %v1448
    %1484 = vmatpush.bf16.msra.mxu0 %v1446
    %1485 = vmatmul.bf16.gmra.mxu0 %v1462
    %v1486 = vpop.f32.mrf.mxu0
    %v1487 = vadd.f32 %v1418, %v1486
    %v1488 = vpop.f32.mrf.mxu0
    %1489 = vdwg.mxu0
    %vm1490 = vcmp.ge.f32.partialorder %v1474, 0.0
    %vm1491 = vcmp.ge.f32.partialorder %v1487, 0.0
    %v1492 = vmul.f32 %v1474, 0.01
    %v1493 = vmul.f32 %v1487, 0.01
    %v1494 = vsel %vm1490, %v1474, %v1492
    %v1495 = vsel %vm1491, %v1487, %v1493
    %v1496 = vld [vmem:[#allocation5] sm:$0xff]
    %v1497 = vld [vmem:[#allocation5 + $0x8] sm:$0xff]
    %v1498 = vld [vmem:[#allocation5 + $0x10] sm:$0xff]
    %v1499 = vld [vmem:[#allocation5 + $0x18] sm:$0xff]
    %v1500 = vld [vmem:[#allocation5 + $0x20] sm:$0xff]
    %v1501 = vld [vmem:[#allocation5 + $0x28] sm:$0xff]
    %v1502 = vld [vmem:[#allocation5 + $0x30] sm:$0xff]
    %v1503 = vld [vmem:[#allocation5 + $0x38] sm:$0xff]
    %v1504 = vld [vmem:[#allocation5 + $0x40] sm:$0xff]
    %v1505 = vld [vmem:[#allocation5 + $0x48] sm:$0xff]
    %v1506 = vld [vmem:[#allocation5 + $0x50] sm:$0xff]
    %v1507 = vld [vmem:[#allocation5 + $0x58] sm:$0xff]
    %v1508 = vld [vmem:[#allocation5 + $0x60] sm:$0xff]
    %v1509 = vld [vmem:[#allocation5 + $0x68] sm:$0xff]
    %v1510 = vld [vmem:[#allocation5 + $0x70] sm:$0xff]
    %v1511 = vld [vmem:[#allocation5 + $0x78] sm:$0xff]
    %v1512 = vld [vmem:[#allocation5 + $0x80] sm:$0xff]
    %v1513 = vld [vmem:[#allocation5 + $0x88] sm:$0xff]
    %v1514 = vld [vmem:[#allocation5 + $0x90] sm:$0xff]
    %v1515 = vld [vmem:[#allocation5 + $0x98] sm:$0xff]
    %v1516 = vld [vmem:[#allocation5 + $0xa0] sm:$0xff]
    %v1517 = vld [vmem:[#allocation5 + $0xa8] sm:$0xff]
    %v1518 = vld [vmem:[#allocation5 + $0xb0] sm:$0xff]
    %v1519 = vld [vmem:[#allocation5 + $0xb8] sm:$0xff]
    %v1520 = vld [vmem:[#allocation5 + $0xc0] sm:$0xff]
    %v1521 = vld [vmem:[#allocation5 + $0xc8] sm:$0xff]
    %v1522 = vld [vmem:[#allocation5 + $0xd0] sm:$0xff]
    %v1523 = vld [vmem:[#allocation5 + $0xd8] sm:$0xff]
    %v1524 = vld [vmem:[#allocation5 + $0xe0] sm:$0xff]
    %v1525 = vld [vmem:[#allocation5 + $0xe8] sm:$0xff]
    %v1526 = vld [vmem:[#allocation5 + $0xf0] sm:$0xff]
    %v1527 = vld [vmem:[#allocation5 + $0xf8] sm:$0xff]
    %v1528 = vld [vmem:[#allocation5 + $0x100] sm:$0xff]
    %v1529 = vld [vmem:[#allocation5 + $0x108] sm:$0xff]
    %v1530 = vld [vmem:[#allocation5 + $0x110] sm:$0xff]
    %v1531 = vld [vmem:[#allocation5 + $0x118] sm:$0xff]
    %v1532 = vld [vmem:[#allocation5 + $0x120] sm:$0xff]
    %v1533 = vld [vmem:[#allocation5 + $0x128] sm:$0xff]
    %v1534 = vld [vmem:[#allocation5 + $0x130] sm:$0xff]
    %v1535 = vld [vmem:[#allocation5 + $0x138] sm:$0xff]
    %v1536 = vld [vmem:[#allocation5 + $0x140] sm:$0xff]
    %v1537 = vld [vmem:[#allocation5 + $0x148] sm:$0xff]
    %v1538 = vld [vmem:[#allocation5 + $0x150] sm:$0xff]
    %v1539 = vld [vmem:[#allocation5 + $0x158] sm:$0xff]
    %v1540 = vld [vmem:[#allocation5 + $0x160] sm:$0xff]
    %v1541 = vld [vmem:[#allocation5 + $0x168] sm:$0xff]
    %v1542 = vld [vmem:[#allocation5 + $0x170] sm:$0xff]
    %v1543 = vld [vmem:[#allocation5 + $0x178] sm:$0xff]
    %v1544 = vld [vmem:[#allocation5 + $0x180] sm:$0xff]
    %v1545 = vld [vmem:[#allocation5 + $0x188] sm:$0xff]
    %v1546 = vld [vmem:[#allocation5 + $0x190] sm:$0xff]
    %v1547 = vld [vmem:[#allocation5 + $0x198] sm:$0xff]
    %v1548 = vld [vmem:[#allocation5 + $0x1a0] sm:$0xff]
    %v1549 = vld [vmem:[#allocation5 + $0x1a8] sm:$0xff]
    %v1550 = vld [vmem:[#allocation5 + $0x1b0] sm:$0xff]
    %v1551 = vld [vmem:[#allocation5 + $0x1b8] sm:$0xff]
    %v1552 = vld [vmem:[#allocation5 + $0x1c0] sm:$0xff]
    %v1553 = vld [vmem:[#allocation5 + $0x1c8] sm:$0xff]
    %v1554 = vld [vmem:[#allocation5 + $0x1d0] sm:$0xff]
    %v1555 = vld [vmem:[#allocation5 + $0x1d8] sm:$0xff]
    %v1556 = vld [vmem:[#allocation5 + $0x1e0] sm:$0xff]
    %v1557 = vld [vmem:[#allocation5 + $0x1e8] sm:$0xff]
    %v1558 = vld [vmem:[#allocation5 + $0x1f0] sm:$0xff]
    %v1559 = vld [vmem:[#allocation5 + $0x1f8] sm:$0xff]
    %v1560 = vld [vmem:[#allocation5 + $0x200] sm:$0xff]
    %v1561 = vld [vmem:[#allocation5 + $0x208] sm:$0xff]
    %v1562 = vld [vmem:[#allocation5 + $0x210] sm:$0xff]
    %v1563 = vld [vmem:[#allocation5 + $0x218] sm:$0xff]
    %v1564 = vld [vmem:[#allocation5 + $0x220] sm:$0xff]
    %v1565 = vld [vmem:[#allocation5 + $0x228] sm:$0xff]
    %v1566 = vld [vmem:[#allocation5 + $0x230] sm:$0xff]
    %v1567 = vld [vmem:[#allocation5 + $0x238] sm:$0xff]
    %v1568 = vld [vmem:[#allocation5 + $0x240] sm:$0xff]
    %v1569 = vld [vmem:[#allocation5 + $0x248] sm:$0xff]
    %v1570 = vld [vmem:[#allocation5 + $0x250] sm:$0xff]
    %v1571 = vld [vmem:[#allocation5 + $0x258] sm:$0xff]
    %v1572 = vld [vmem:[#allocation5 + $0x260] sm:$0xff]
    %v1573 = vld [vmem:[#allocation5 + $0x268] sm:$0xff]
    %v1574 = vld [vmem:[#allocation5 + $0x270] sm:$0xff]
    %v1575 = vld [vmem:[#allocation5 + $0x278] sm:$0xff]
    %v1576 = vld [vmem:[#allocation5 + $0x280] sm:$0xff]
    %v1577 = vld [vmem:[#allocation5 + $0x288] sm:$0xff]
    %v1578 = vld [vmem:[#allocation5 + $0x290] sm:$0xff]
    %v1579 = vld [vmem:[#allocation5 + $0x298] sm:$0xff]
    %v1580 = vld [vmem:[#allocation5 + $0x2a0] sm:$0xff]
    %v1581 = vld [vmem:[#allocation5 + $0x2a8] sm:$0xff]
    %v1582 = vld [vmem:[#allocation5 + $0x2b0] sm:$0xff]
    %v1583 = vld [vmem:[#allocation5 + $0x2b8] sm:$0xff]
    %v1584 = vld [vmem:[#allocation5 + $0x2c0] sm:$0xff]
    %v1585 = vld [vmem:[#allocation5 + $0x2c8] sm:$0xff]
    %v1586 = vld [vmem:[#allocation5 + $0x2d0] sm:$0xff]
    %v1587 = vld [vmem:[#allocation5 + $0x2d8] sm:$0xff]
    %v1588 = vld [vmem:[#allocation5 + $0x2e0] sm:$0xff]
    %v1589 = vld [vmem:[#allocation5 + $0x2e8] sm:$0xff]
    %v1590 = vld [vmem:[#allocation5 + $0x2f0] sm:$0xff]
    %v1591 = vld [vmem:[#allocation5 + $0x2f8] sm:$0xff]
    %v1592 = vld [vmem:[#allocation5 + $0x300] sm:$0xff]
    %v1593 = vld [vmem:[#allocation5 + $0x308] sm:$0xff]
    %v1594 = vld [vmem:[#allocation5 + $0x310] sm:$0xff]
    %v1595 = vld [vmem:[#allocation5 + $0x318] sm:$0xff]
    %v1596 = vld [vmem:[#allocation5 + $0x320] sm:$0xff]
    %v1597 = vld [vmem:[#allocation5 + $0x328] sm:$0xff]
    %v1598 = vld [vmem:[#allocation5 + $0x330] sm:$0xff]
    %v1599 = vld [vmem:[#allocation5 + $0x338] sm:$0xff]
    %v1600 = vld [vmem:[#allocation5 + $0x340] sm:$0xff]
    %v1601 = vld [vmem:[#allocation5 + $0x348] sm:$0xff]
    %v1602 = vld [vmem:[#allocation5 + $0x350] sm:$0xff]
    %v1603 = vld [vmem:[#allocation5 + $0x358] sm:$0xff]
    %v1604 = vld [vmem:[#allocation5 + $0x360] sm:$0xff]
    %v1605 = vld [vmem:[#allocation5 + $0x368] sm:$0xff]
    %v1606 = vld [vmem:[#allocation5 + $0x370] sm:$0xff]
    %v1607 = vld [vmem:[#allocation5 + $0x378] sm:$0xff]
    %v1608 = vld [vmem:[#allocation5 + $0x380] sm:$0xff]
    %v1609 = vld [vmem:[#allocation5 + $0x388] sm:$0xff]
    %v1610 = vld [vmem:[#allocation5 + $0x390] sm:$0xff]
    %v1611 = vld [vmem:[#allocation5 + $0x398] sm:$0xff]
    %v1612 = vld [vmem:[#allocation5 + $0x3a0] sm:$0xff]
    %v1613 = vld [vmem:[#allocation5 + $0x3a8] sm:$0xff]
    %v1614 = vld [vmem:[#allocation5 + $0x3b0] sm:$0xff]
    %v1615 = vld [vmem:[#allocation5 + $0x3b8] sm:$0xff]
    %v1616 = vld [vmem:[#allocation5 + $0x3c0] sm:$0xff]
    %v1617 = vld [vmem:[#allocation5 + $0x3c8] sm:$0xff]
    %v1618 = vld [vmem:[#allocation5 + $0x3d0] sm:$0xff]
    %v1619 = vld [vmem:[#allocation5 + $0x3d8] sm:$0xff]
    %v1620 = vld [vmem:[#allocation5 + $0x3e0] sm:$0xff]
    %v1621 = vld [vmem:[#allocation5 + $0x3e8] sm:$0xff]
    %v1622 = vld [vmem:[#allocation5 + $0x3f0] sm:$0xff]
    %v1623 = vld [vmem:[#allocation5 + $0x3f8] sm:$0xff]
    %v1624 = vld [vmem:[%s16] sm:$0xff]
    %v1625 = vpack.c.bf16 %v1494, %v1494
    %v1626 = vpack.c.bf16 %v1495, %v1495
    %v1628 = vperm.slane %v1624, 0
    %v1629 = vperm.slane %v1624, 1
    %v1630 = vperm.slane %v1624, 2
    %v1631 = vperm.slane %v1624, 3
    %v1632 = vperm.slane %v1624, 4
    %v1633 = vperm.slane %v1624, 5
    %v1634 = vperm.slane %v1624, 6
    %v1635 = vperm.slane %v1624, 7
    %v1772 = vunpack.c.l.b16 %v1496
    %v1773 = vunpack.c.h.b16 %v1496
    %v1774 = vunpack.c.l.b16 %v1497
    %v1775 = vunpack.c.h.b16 %v1497
    %v1776 = vunpack.c.l.b16 %v1498
    %v1777 = vunpack.c.h.b16 %v1498
    %v1778 = vunpack.c.l.b16 %v1499
    %v1779 = vunpack.c.h.b16 %v1499
    %v1780 = vunpack.c.l.b16 %v1500
    %v1781 = vunpack.c.h.b16 %v1500
    %v1782 = vunpack.c.l.b16 %v1501
    %v1783 = vunpack.c.h.b16 %v1501
    %v1784 = vunpack.c.l.b16 %v1502
    %v1785 = vunpack.c.h.b16 %v1502
    %v1786 = vunpack.c.l.b16 %v1503
    %v1787 = vunpack.c.h.b16 %v1503
    %v1788 = vunpack.c.l.b16 %v1504
    %v1789 = vunpack.c.h.b16 %v1504
    %v1790 = vunpack.c.l.b16 %v1505
    %v1791 = vunpack.c.h.b16 %v1505
    %v1792 = vunpack.c.l.b16 %v1506
    %v1793 = vunpack.c.h.b16 %v1506
    %v1794 = vunpack.c.l.b16 %v1507
    %v1795 = vunpack.c.h.b16 %v1507
    %v1796 = vunpack.c.l.b16 %v1508
    %v1797 = vunpack.c.h.b16 %v1508
    %v1798 = vunpack.c.l.b16 %v1509
    %v1799 = vunpack.c.h.b16 %v1509
    %v1800 = vunpack.c.l.b16 %v1510
    %v1801 = vunpack.c.h.b16 %v1510
    %v1802 = vunpack.c.l.b16 %v1511
    %v1803 = vunpack.c.h.b16 %v1511
    %v1804 = vunpack.c.l.b16 %v1512
    %v1805 = vunpack.c.h.b16 %v1512
    %v1806 = vunpack.c.l.b16 %v1513
    %v1807 = vunpack.c.h.b16 %v1513
    %v1808 = vunpack.c.l.b16 %v1514
    %v1809 = vunpack.c.h.b16 %v1514
    %v1810 = vunpack.c.l.b16 %v1515
    %v1811 = vunpack.c.h.b16 %v1515
    %v1812 = vunpack.c.l.b16 %v1516
    %v1813 = vunpack.c.h.b16 %v1516
    %v1814 = vunpack.c.l.b16 %v1517
    %v1815 = vunpack.c.h.b16 %v1517
    %v1816 = vunpack.c.l.b16 %v1518
    %v1817 = vunpack.c.h.b16 %v1518
    %v1818 = vunpack.c.l.b16 %v1519
    %v1819 = vunpack.c.h.b16 %v1519
    %v1820 = vunpack.c.l.b16 %v1520
    %v1821 = vunpack.c.h.b16 %v1520
    %v1822 = vunpack.c.l.b16 %v1521
    %v1823 = vunpack.c.h.b16 %v1521
    %v1824 = vunpack.c.l.b16 %v1522
    %v1825 = vunpack.c.h.b16 %v1522
    %v1826 = vunpack.c.l.b16 %v1523
    %v1827 = vunpack.c.h.b16 %v1523
    %v1828 = vunpack.c.l.b16 %v1524
    %v1829 = vunpack.c.h.b16 %v1524
    %v1830 = vunpack.c.l.b16 %v1525
    %v1831 = vunpack.c.h.b16 %v1525
    %v1832 = vunpack.c.l.b16 %v1526
    %v1833 = vunpack.c.h.b16 %v1526
    %v1834 = vunpack.c.l.b16 %v1527
    %v1835 = vunpack.c.h.b16 %v1527
    %v1836 = vunpack.c.l.b16 %v1528
    %v1837 = vunpack.c.h.b16 %v1528
    %v1838 = vunpack.c.l.b16 %v1529
    %v1839 = vunpack.c.h.b16 %v1529
    %v1840 = vunpack.c.l.b16 %v1530
    %v1841 = vunpack.c.h.b16 %v1530
    %v1842 = vunpack.c.l.b16 %v1531
    %v1843 = vunpack.c.h.b16 %v1531
    %v1844 = vunpack.c.l.b16 %v1532
    %v1845 = vunpack.c.h.b16 %v1532
    %v1846 = vunpack.c.l.b16 %v1533
    %v1847 = vunpack.c.h.b16 %v1533
    %v1848 = vunpack.c.l.b16 %v1534
    %v1849 = vunpack.c.h.b16 %v1534
    %v1850 = vunpack.c.l.b16 %v1535
    %v1851 = vunpack.c.h.b16 %v1535
    %v1852 = vunpack.c.l.b16 %v1536
    %v1853 = vunpack.c.h.b16 %v1536
    %v1854 = vunpack.c.l.b16 %v1537
    %v1855 = vunpack.c.h.b16 %v1537
    %v1856 = vunpack.c.l.b16 %v1538
    %v1857 = vunpack.c.h.b16 %v1538
    %v1858 = vunpack.c.l.b16 %v1539
    %v1859 = vunpack.c.h.b16 %v1539
    %v1860 = vunpack.c.l.b16 %v1540
    %v1861 = vunpack.c.h.b16 %v1540
    %v1862 = vunpack.c.l.b16 %v1541
    %v1863 = vunpack.c.h.b16 %v1541
    %v1864 = vunpack.c.l.b16 %v1542
    %v1865 = vunpack.c.h.b16 %v1542
    %v1866 = vunpack.c.l.b16 %v1543
    %v1867 = vunpack.c.h.b16 %v1543
    %v1868 = vunpack.c.l.b16 %v1544
    %v1869 = vunpack.c.h.b16 %v1544
    %v1870 = vunpack.c.l.b16 %v1545
    %v1871 = vunpack.c.h.b16 %v1545
    %v1872 = vunpack.c.l.b16 %v1546
    %v1873 = vunpack.c.h.b16 %v1546
    %v1874 = vunpack.c.l.b16 %v1547
    %v1875 = vunpack.c.h.b16 %v1547
    %v1876 = vunpack.c.l.b16 %v1548
    %v1877 = vunpack.c.h.b16 %v1548
    %v1878 = vunpack.c.l.b16 %v1549
    %v1879 = vunpack.c.h.b16 %v1549
    %v1880 = vunpack.c.l.b16 %v1550
    %v1881 = vunpack.c.h.b16 %v1550
    %v1882 = vunpack.c.l.b16 %v1551
    %v1883 = vunpack.c.h.b16 %v1551
    %v1884 = vunpack.c.l.b16 %v1552
    %v1885 = vunpack.c.h.b16 %v1552
    %v1886 = vunpack.c.l.b16 %v1553
    %v1887 = vunpack.c.h.b16 %v1553
    %v1888 = vunpack.c.l.b16 %v1554
    %v1889 = vunpack.c.h.b16 %v1554
    %v1890 = vunpack.c.l.b16 %v1555
    %v1891 = vunpack.c.h.b16 %v1555
    %v1892 = vunpack.c.l.b16 %v1556
    %v1893 = vunpack.c.h.b16 %v1556
    %v1894 = vunpack.c.l.b16 %v1557
    %v1895 = vunpack.c.h.b16 %v1557
    %v1896 = vunpack.c.l.b16 %v1558
    %v1897 = vunpack.c.h.b16 %v1558
    %v1898 = vunpack.c.l.b16 %v1559
    %v1899 = vunpack.c.h.b16 %v1559
    %v1900 = vunpack.c.l.b16 %v1560
    %v1901 = vunpack.c.h.b16 %v1560
    %v1902 = vunpack.c.l.b16 %v1561
    %v1903 = vunpack.c.h.b16 %v1561
    %v1904 = vunpack.c.l.b16 %v1562
    %v1905 = vunpack.c.h.b16 %v1562
    %v1906 = vunpack.c.l.b16 %v1563
    %v1907 = vunpack.c.h.b16 %v1563
    %v1908 = vunpack.c.l.b16 %v1564
    %v1909 = vunpack.c.h.b16 %v1564
    %v1910 = vunpack.c.l.b16 %v1565
    %v1911 = vunpack.c.h.b16 %v1565
    %v1912 = vunpack.c.l.b16 %v1566
    %v1913 = vunpack.c.h.b16 %v1566
    %v1914 = vunpack.c.l.b16 %v1567
    %v1915 = vunpack.c.h.b16 %v1567
    %v1916 = vunpack.c.l.b16 %v1568
    %v1917 = vunpack.c.h.b16 %v1568
    %v1918 = vunpack.c.l.b16 %v1569
    %v1919 = vunpack.c.h.b16 %v1569
    %v1920 = vunpack.c.l.b16 %v1570
    %v1921 = vunpack.c.h.b16 %v1570
    %v1922 = vunpack.c.l.b16 %v1571
    %v1923 = vunpack.c.h.b16 %v1571
    %v1924 = vunpack.c.l.b16 %v1572
    %v1925 = vunpack.c.h.b16 %v1572
    %v1926 = vunpack.c.l.b16 %v1573
    %v1927 = vunpack.c.h.b16 %v1573
    %v1928 = vunpack.c.l.b16 %v1574
    %v1929 = vunpack.c.h.b16 %v1574
    %v1930 = vunpack.c.l.b16 %v1575
    %v1931 = vunpack.c.h.b16 %v1575
    %v1932 = vunpack.c.l.b16 %v1576
    %v1933 = vunpack.c.h.b16 %v1576
    %v1934 = vunpack.c.l.b16 %v1577
    %v1935 = vunpack.c.h.b16 %v1577
    %v1936 = vunpack.c.l.b16 %v1578
    %v1937 = vunpack.c.h.b16 %v1578
    %v1938 = vunpack.c.l.b16 %v1579
    %v1939 = vunpack.c.h.b16 %v1579
    %v1940 = vunpack.c.l.b16 %v1580
    %v1941 = vunpack.c.h.b16 %v1580
    %v1942 = vunpack.c.l.b16 %v1581
    %v1943 = vunpack.c.h.b16 %v1581
    %v1944 = vunpack.c.l.b16 %v1582
    %v1945 = vunpack.c.h.b16 %v1582
    %v1946 = vunpack.c.l.b16 %v1583
    %v1947 = vunpack.c.h.b16 %v1583
    %v1948 = vunpack.c.l.b16 %v1584
    %v1949 = vunpack.c.h.b16 %v1584
    %v1950 = vunpack.c.l.b16 %v1585
    %v1951 = vunpack.c.h.b16 %v1585
    %v1952 = vunpack.c.l.b16 %v1586
    %v1953 = vunpack.c.h.b16 %v1586
    %v1954 = vunpack.c.l.b16 %v1587
    %v1955 = vunpack.c.h.b16 %v1587
    %v1956 = vunpack.c.l.b16 %v1588
    %v1957 = vunpack.c.h.b16 %v1588
    %v1958 = vunpack.c.l.b16 %v1589
    %v1959 = vunpack.c.h.b16 %v1589
    %v1960 = vunpack.c.l.b16 %v1590
    %v1961 = vunpack.c.h.b16 %v1590
    %v1962 = vunpack.c.l.b16 %v1591
    %v1963 = vunpack.c.h.b16 %v1591
    %v1964 = vunpack.c.l.b16 %v1592
    %v1965 = vunpack.c.h.b16 %v1592
    %v1966 = vunpack.c.l.b16 %v1593
    %v1967 = vunpack.c.h.b16 %v1593
    %v1968 = vunpack.c.l.b16 %v1594
    %v1969 = vunpack.c.h.b16 %v1594
    %v1970 = vunpack.c.l.b16 %v1595
    %v1971 = vunpack.c.h.b16 %v1595
    %v1972 = vunpack.c.l.b16 %v1596
    %v1973 = vunpack.c.h.b16 %v1596
    %v1974 = vunpack.c.l.b16 %v1597
    %v1975 = vunpack.c.h.b16 %v1597
    %v1976 = vunpack.c.l.b16 %v1598
    %v1977 = vunpack.c.h.b16 %v1598
    %v1978 = vunpack.c.l.b16 %v1599
    %v1979 = vunpack.c.h.b16 %v1599
    %v1980 = vunpack.c.l.b16 %v1600
    %v1981 = vunpack.c.h.b16 %v1600
    %v1982 = vunpack.c.l.b16 %v1601
    %v1983 = vunpack.c.h.b16 %v1601
    %v1984 = vunpack.c.l.b16 %v1602
    %v1985 = vunpack.c.h.b16 %v1602
    %v1986 = vunpack.c.l.b16 %v1603
    %v1987 = vunpack.c.h.b16 %v1603
    %v1988 = vunpack.c.l.b16 %v1604
    %v1989 = vunpack.c.h.b16 %v1604
    %v1990 = vunpack.c.l.b16 %v1605
    %v1991 = vunpack.c.h.b16 %v1605
    %v1992 = vunpack.c.l.b16 %v1606
    %v1993 = vunpack.c.h.b16 %v1606
    %v1994 = vunpack.c.l.b16 %v1607
    %v1995 = vunpack.c.h.b16 %v1607
    %v1996 = vunpack.c.l.b16 %v1608
    %v1997 = vunpack.c.h.b16 %v1608
    %v1998 = vunpack.c.l.b16 %v1609
    %v1999 = vunpack.c.h.b16 %v1609
    %v2000 = vunpack.c.l.b16 %v1610
    %v2001 = vunpack.c.h.b16 %v1610
    %v2002 = vunpack.c.l.b16 %v1611
    %v2003 = vunpack.c.h.b16 %v1611
    %v2004 = vunpack.c.l.b16 %v1612
    %v2005 = vunpack.c.h.b16 %v1612
    %v2006 = vunpack.c.l.b16 %v1613
    %v2007 = vunpack.c.h.b16 %v1613
    %v2008 = vunpack.c.l.b16 %v1614
    %v2009 = vunpack.c.h.b16 %v1614
    %v2010 = vunpack.c.l.b16 %v1615
    %v2011 = vunpack.c.h.b16 %v1615
    %v2012 = vunpack.c.l.b16 %v1616
    %v2013 = vunpack.c.h.b16 %v1616
    %v2014 = vunpack.c.l.b16 %v1617
    %v2015 = vunpack.c.h.b16 %v1617
    %v2016 = vunpack.c.l.b16 %v1618
    %v2017 = vunpack.c.h.b16 %v1618
    %v2018 = vunpack.c.l.b16 %v1619
    %v2019 = vunpack.c.h.b16 %v1619
    %v2020 = vunpack.c.l.b16 %v1620
    %v2021 = vunpack.c.h.b16 %v1620
    %v2022 = vunpack.c.l.b16 %v1621
    %v2023 = vunpack.c.h.b16 %v1621
    %v2024 = vunpack.c.l.b16 %v1622
    %v2025 = vunpack.c.h.b16 %v1622
    %v2026 = vunpack.c.l.b16 %v1623
    %v2027 = vunpack.c.h.b16 %v1623
    %v2028 = vpack.c.b16 %v1780, %v1772
    %v2029 = vpack.c.b16 %v1781, %v1773
    %v2030 = vpack.c.b16 %v1782, %v1774
    %v2031 = vpack.c.b16 %v1783, %v1775
    %v2032 = vpack.c.b16 %v1784, %v1776
    %v2033 = vpack.c.b16 %v1785, %v1777
    %v2034 = vpack.c.b16 %v1786, %v1778
    %v2035 = vpack.c.b16 %v1787, %v1779
    %v2036 = vpack.c.b16 %v1796, %v1788
    %v2037 = vpack.c.b16 %v1797, %v1789
    %v2038 = vpack.c.b16 %v1798, %v1790
    %v2039 = vpack.c.b16 %v1799, %v1791
    %v2040 = vpack.c.b16 %v1800, %v1792
    %v2041 = vpack.c.b16 %v1801, %v1793
    %v2042 = vpack.c.b16 %v1802, %v1794
    %v2043 = vpack.c.b16 %v1803, %v1795
    %v2044 = vpack.c.b16 %v1812, %v1804
    %v2045 = vpack.c.b16 %v1813, %v1805
    %v2046 = vpack.c.b16 %v1814, %v1806
    %v2047 = vpack.c.b16 %v1815, %v1807
    %v2048 = vpack.c.b16 %v1816, %v1808
    %v2049 = vpack.c.b16 %v1817, %v1809
    %v2050 = vpack.c.b16 %v1818, %v1810
    %v2051 = vpack.c.b16 %v1819, %v1811
    %v2052 = vpack.c.b16 %v1828, %v1820
    %v2053 = vpack.c.b16 %v1829, %v1821
    %v2054 = vpack.c.b16 %v1830, %v1822
    %v2055 = vpack.c.b16 %v1831, %v1823
    %v2056 = vpack.c.b16 %v1832, %v1824
    %v2057 = vpack.c.b16 %v1833, %v1825
    %v2058 = vpack.c.b16 %v1834, %v1826
    %v2059 = vpack.c.b16 %v1835, %v1827
    %v2060 = vpack.c.b16 %v1844, %v1836
    %v2061 = vpack.c.b16 %v1845, %v1837
    %v2062 = vpack.c.b16 %v1846, %v1838
    %v2063 = vpack.c.b16 %v1847, %v1839
    %v2064 = vpack.c.b16 %v1848, %v1840
    %v2065 = vpack.c.b16 %v1849, %v1841
    %v2066 = vpack.c.b16 %v1850, %v1842
    %v2067 = vpack.c.b16 %v1851, %v1843
    %v2068 = vpack.c.b16 %v1860, %v1852
    %v2069 = vpack.c.b16 %v1861, %v1853
    %v2070 = vpack.c.b16 %v1862, %v1854
    %v2071 = vpack.c.b16 %v1863, %v1855
    %v2072 = vpack.c.b16 %v1864, %v1856
    %v2073 = vpack.c.b16 %v1865, %v1857
    %v2074 = vpack.c.b16 %v1866, %v1858
    %v2075 = vpack.c.b16 %v1867, %v1859
    %v2076 = vpack.c.b16 %v1876, %v1868
    %v2077 = vpack.c.b16 %v1877, %v1869
    %v2078 = vpack.c.b16 %v1878, %v1870
    %v2079 = vpack.c.b16 %v1879, %v1871
    %v2080 = vpack.c.b16 %v1880, %v1872
    %v2081 = vpack.c.b16 %v1881, %v1873
    %v2082 = vpack.c.b16 %v1882, %v1874
    %v2083 = vpack.c.b16 %v1883, %v1875
    %v2084 = vpack.c.b16 %v1892, %v1884
    %v2085 = vpack.c.b16 %v1893, %v1885
    %v2086 = vpack.c.b16 %v1894, %v1886
    %v2087 = vpack.c.b16 %v1895, %v1887
    %v2088 = vpack.c.b16 %v1896, %v1888
    %v2089 = vpack.c.b16 %v1897, %v1889
    %v2090 = vpack.c.b16 %v1898, %v1890
    %v2091 = vpack.c.b16 %v1899, %v1891
    %v2092 = vpack.c.b16 %v1908, %v1900
    %v2093 = vpack.c.b16 %v1909, %v1901
    %v2094 = vpack.c.b16 %v1910, %v1902
    %v2095 = vpack.c.b16 %v1911, %v1903
    %v2096 = vpack.c.b16 %v1912, %v1904
    %v2097 = vpack.c.b16 %v1913, %v1905
    %v2098 = vpack.c.b16 %v1914, %v1906
    %v2099 = vpack.c.b16 %v1915, %v1907
    %v2100 = vpack.c.b16 %v1924, %v1916
    %v2101 = vpack.c.b16 %v1925, %v1917
    %v2102 = vpack.c.b16 %v1926, %v1918
    %v2103 = vpack.c.b16 %v1927, %v1919
    %v2104 = vpack.c.b16 %v1928, %v1920
    %v2105 = vpack.c.b16 %v1929, %v1921
    %v2106 = vpack.c.b16 %v1930, %v1922
    %v2107 = vpack.c.b16 %v1931, %v1923
    %v2108 = vpack.c.b16 %v1940, %v1932
    %v2109 = vpack.c.b16 %v1941, %v1933
    %v2110 = vpack.c.b16 %v1942, %v1934
    %v2111 = vpack.c.b16 %v1943, %v1935
    %v2112 = vpack.c.b16 %v1944, %v1936
    %v2113 = vpack.c.b16 %v1945, %v1937
    %v2114 = vpack.c.b16 %v1946, %v1938
    %v2115 = vpack.c.b16 %v1947, %v1939
    %v2116 = vpack.c.b16 %v1956, %v1948
    %v2117 = vpack.c.b16 %v1957, %v1949
    %v2118 = vpack.c.b16 %v1958, %v1950
    %v2119 = vpack.c.b16 %v1959, %v1951
    %v2120 = vpack.c.b16 %v1960, %v1952
    %v2121 = vpack.c.b16 %v1961, %v1953
    %v2122 = vpack.c.b16 %v1962, %v1954
    %v2123 = vpack.c.b16 %v1963, %v1955
    %v2124 = vpack.c.b16 %v1972, %v1964
    %v2125 = vpack.c.b16 %v1973, %v1965
    %v2126 = vpack.c.b16 %v1974, %v1966
    %v2127 = vpack.c.b16 %v1975, %v1967
    %v2128 = vpack.c.b16 %v1976, %v1968
    %v2129 = vpack.c.b16 %v1977, %v1969
    %v2130 = vpack.c.b16 %v1978, %v1970
    %v2131 = vpack.c.b16 %v1979, %v1971
    %v2132 = vpack.c.b16 %v1988, %v1980
    %v2133 = vpack.c.b16 %v1989, %v1981
    %v2134 = vpack.c.b16 %v1990, %v1982
    %v2135 = vpack.c.b16 %v1991, %v1983
    %v2136 = vpack.c.b16 %v1992, %v1984
    %v2137 = vpack.c.b16 %v1993, %v1985
    %v2138 = vpack.c.b16 %v1994, %v1986
    %v2139 = vpack.c.b16 %v1995, %v1987
    %v2140 = vpack.c.b16 %v2004, %v1996
    %v2141 = vpack.c.b16 %v2005, %v1997
    %v2142 = vpack.c.b16 %v2006, %v1998
    %v2143 = vpack.c.b16 %v2007, %v1999
    %v2144 = vpack.c.b16 %v2008, %v2000
    %v2145 = vpack.c.b16 %v2009, %v2001
    %v2146 = vpack.c.b16 %v2010, %v2002
    %v2147 = vpack.c.b16 %v2011, %v2003
    %v2148 = vpack.c.b16 %v2020, %v2012
    %v2149 = vpack.c.b16 %v2021, %v2013
    %v2150 = vpack.c.b16 %v2022, %v2014
    %v2151 = vpack.c.b16 %v2023, %v2015
    %v2152 = vpack.c.b16 %v2024, %v2016
    %v2153 = vpack.c.b16 %v2025, %v2017
    %v2154 = vpack.c.b16 %v2026, %v2018
    %v2155 = vpack.c.b16 %v2027, %v2019
    %2284 = vmatpush.bf16.msra.mxu0 %v2084
    %2285 = vmatpush.bf16.msra.mxu0 %v2076
    %2286 = vmatpush.bf16.msra.mxu0 %v2068
    %2287 = vmatpush.bf16.msra.mxu0 %v2060
    %2288 = vmatpush.bf16.msra.mxu0 %v2052
    %2289 = vmatpush.bf16.msra.mxu0 %v2044
    %2290 = vmatpush.bf16.msra.mxu0 %v2036
    %2291 = vmatpush.bf16.msra.mxu0 %v2028
    %2292 = vmatmul.bf16.gmra.mxu0 %v1625
    %v2293 = vpop.f32.mrf.mxu0
    %v2294 = vadd.f32 %v1628, %v2293
    %v2295 = vpop.f32.mrf.mxu0
    %2296 = vdwg.mxu0
    %2297 = vmatpush.bf16.msra.mxu0 %v2148
    %2298 = vmatpush.bf16.msra.mxu0 %v2140
    %2299 = vmatpush.bf16.msra.mxu0 %v2132
    %2300 = vmatpush.bf16.msra.mxu0 %v2124
    %2301 = vmatpush.bf16.msra.mxu0 %v2116
    %2302 = vmatpush.bf16.msra.mxu0 %v2108
    %2303 = vmatpush.bf16.msra.mxu0 %v2100
    %2304 = vmatpush.bf16.msra.mxu0 %v2092
    %2305 = vmatmul.bf16.gmra.mxu0 %v1626
    %v2306 = vpop.f32.mrf.mxu0
    %v2307 = vadd.f32 %v2294, %v2306
    %v2308 = vpop.f32.mrf.mxu0
    %2309 = vdwg.mxu0
    %2310 = vmatpush.bf16.msra.mxu0 %v2085
    %2311 = vmatpush.bf16.msra.mxu0 %v2077
    %2312 = vmatpush.bf16.msra.mxu0 %v2069
    %2313 = vmatpush.bf16.msra.mxu0 %v2061
    %2314 = vmatpush.bf16.msra.mxu0 %v2053
    %2315 = vmatpush.bf16.msra.mxu0 %v2045
    %2316 = vmatpush.bf16.msra.mxu0 %v2037
    %2317 = vmatpush.bf16.msra.mxu0 %v2029
    %2318 = vmatmul.bf16.gmra.mxu0 %v1625
    %v2319 = vpop.f32.mrf.mxu0
    %v2320 = vadd.f32 %v1629, %v2319
    %v2321 = vpop.f32.mrf.mxu0
    %2322 = vdwg.mxu0
    %2323 = vmatpush.bf16.msra.mxu0 %v2149
    %2324 = vmatpush.bf16.msra.mxu0 %v2141
    %2325 = vmatpush.bf16.msra.mxu0 %v2133
    %2326 = vmatpush.bf16.msra.mxu0 %v2125
    %2327 = vmatpush.bf16.msra.mxu0 %v2117
    %2328 = vmatpush.bf16.msra.mxu0 %v2109
    %2329 = vmatpush.bf16.msra.mxu0 %v2101
    %2330 = vmatpush.bf16.msra.mxu0 %v2093
    %2331 = vmatmul.bf16.gmra.mxu0 %v1626
    %v2332 = vpop.f32.mrf.mxu0
    %v2333 = vadd.f32 %v2320, %v2332
    %v2334 = vpop.f32.mrf.mxu0
    %2335 = vdwg.mxu0
    %2336 = vmatpush.bf16.msra.mxu0 %v2086
    %2337 = vmatpush.bf16.msra.mxu0 %v2078
    %2338 = vmatpush.bf16.msra.mxu0 %v2070
    %2339 = vmatpush.bf16.msra.mxu0 %v2062
    %2340 = vmatpush.bf16.msra.mxu0 %v2054
    %2341 = vmatpush.bf16.msra.mxu0 %v2046
    %2342 = vmatpush.bf16.msra.mxu0 %v2038
    %2343 = vmatpush.bf16.msra.mxu0 %v2030
    %2344 = vmatmul.bf16.gmra.mxu0 %v1625
    %v2345 = vpop.f32.mrf.mxu0
    %v2346 = vadd.f32 %v1630, %v2345
    %v2347 = vpop.f32.mrf.mxu0
    %2348 = vdwg.mxu0
    %2349 = vmatpush.bf16.msra.mxu0 %v2150
    %2350 = vmatpush.bf16.msra.mxu0 %v2142
    %2351 = vmatpush.bf16.msra.mxu0 %v2134
    %2352 = vmatpush.bf16.msra.mxu0 %v2126
    %2353 = vmatpush.bf16.msra.mxu0 %v2118
    %2354 = vmatpush.bf16.msra.mxu0 %v2110
    %2355 = vmatpush.bf16.msra.mxu0 %v2102
    %2356 = vmatpush.bf16.msra.mxu0 %v2094
    %2357 = vmatmul.bf16.gmra.mxu0 %v1626
    %v2358 = vpop.f32.mrf.mxu0
    %v2359 = vadd.f32 %v2346, %v2358
    %v2360 = vpop.f32.mrf.mxu0
    %2361 = vdwg.mxu0
    %2362 = vmatpush.bf16.msra.mxu0 %v2087
    %2363 = vmatpush.bf16.msra.mxu0 %v2079
    %2364 = vmatpush.bf16.msra.mxu0 %v2071
    %2365 = vmatpush.bf16.msra.mxu0 %v2063
    %2366 = vmatpush.bf16.msra.mxu0 %v2055
    %2367 = vmatpush.bf16.msra.mxu0 %v2047
    %2368 = vmatpush.bf16.msra.mxu0 %v2039
    %2369 = vmatpush.bf16.msra.mxu0 %v2031
    %2370 = vmatmul.bf16.gmra.mxu0 %v1625
    %v2371 = vpop.f32.mrf.mxu0
    %v2372 = vadd.f32 %v1631, %v2371
    %v2373 = vpop.f32.mrf.mxu0
    %2374 = vdwg.mxu0
    %2375 = vmatpush.bf16.msra.mxu0 %v2151
    %2376 = vmatpush.bf16.msra.mxu0 %v2143
    %2377 = vmatpush.bf16.msra.mxu0 %v2135
    %2378 = vmatpush.bf16.msra.mxu0 %v2127
    %2379 = vmatpush.bf16.msra.mxu0 %v2119
    %2380 = vmatpush.bf16.msra.mxu0 %v2111
    %2381 = vmatpush.bf16.msra.mxu0 %v2103
    %2382 = vmatpush.bf16.msra.mxu0 %v2095
    %2383 = vmatmul.bf16.gmra.mxu0 %v1626
    %v2384 = vpop.f32.mrf.mxu0
    %v2385 = vadd.f32 %v2372, %v2384
    %v2386 = vpop.f32.mrf.mxu0
    %2387 = vdwg.mxu0
    %2388 = vmatpush.bf16.msra.mxu0 %v2088
    %2389 = vmatpush.bf16.msra.mxu0 %v2080
    %2390 = vmatpush.bf16.msra.mxu0 %v2072
    %2391 = vmatpush.bf16.msra.mxu0 %v2064
    %2392 = vmatpush.bf16.msra.mxu0 %v2056
    %2393 = vmatpush.bf16.msra.mxu0 %v2048
    %2394 = vmatpush.bf16.msra.mxu0 %v2040
    %2395 = vmatpush.bf16.msra.mxu0 %v2032
    %2396 = vmatmul.bf16.gmra.mxu0 %v1625
    %v2397 = vpop.f32.mrf.mxu0
    %v2398 = vadd.f32 %v1632, %v2397
    %v2399 = vpop.f32.mrf.mxu0
    %2400 = vdwg.mxu0
    %2401 = vmatpush.bf16.msra.mxu0 %v2152
    %2402 = vmatpush.bf16.msra.mxu0 %v2144
    %2403 = vmatpush.bf16.msra.mxu0 %v2136
    %2404 = vmatpush.bf16.msra.mxu0 %v2128
    %2405 = vmatpush.bf16.msra.mxu0 %v2120
    %2406 = vmatpush.bf16.msra.mxu0 %v2112
    %2407 = vmatpush.bf16.msra.mxu0 %v2104
    %2408 = vmatpush.bf16.msra.mxu0 %v2096
    %2409 = vmatmul.bf16.gmra.mxu0 %v1626
    %v2410 = vpop.f32.mrf.mxu0
    %v2411 = vadd.f32 %v2398, %v2410
    %v2412 = vpop.f32.mrf.mxu0
    %2413 = vdwg.mxu0
    %2414 = vmatpush.bf16.msra.mxu0 %v2089
    %2415 = vmatpush.bf16.msra.mxu0 %v2081
    %2416 = vmatpush.bf16.msra.mxu0 %v2073
    %2417 = vmatpush.bf16.msra.mxu0 %v2065
    %2418 = vmatpush.bf16.msra.mxu0 %v2057
    %2419 = vmatpush.bf16.msra.mxu0 %v2049
    %2420 = vmatpush.bf16.msra.mxu0 %v2041
    %2421 = vmatpush.bf16.msra.mxu0 %v2033
    %2422 = vmatmul.bf16.gmra.mxu0 %v1625
    %v2423 = vpop.f32.mrf.mxu0
    %v2424 = vadd.f32 %v1633, %v2423
    %v2425 = vpop.f32.mrf.mxu0
    %2426 = vdwg.mxu0
    %2427 = vmatpush.bf16.msra.mxu0 %v2153
    %2428 = vmatpush.bf16.msra.mxu0 %v2145
    %2429 = vmatpush.bf16.msra.mxu0 %v2137
    %2430 = vmatpush.bf16.msra.mxu0 %v2129
    %2431 = vmatpush.bf16.msra.mxu0 %v2121
    %2432 = vmatpush.bf16.msra.mxu0 %v2113
    %2433 = vmatpush.bf16.msra.mxu0 %v2105
    %2434 = vmatpush.bf16.msra.mxu0 %v2097
    %2435 = vmatmul.bf16.gmra.mxu0 %v1626
    %v2436 = vpop.f32.mrf.mxu0
    %v2437 = vadd.f32 %v2424, %v2436
    %v2438 = vpop.f32.mrf.mxu0
    %2439 = vdwg.mxu0
    %2440 = vmatpush.bf16.msra.mxu0 %v2090
    %2441 = vmatpush.bf16.msra.mxu0 %v2082
    %2442 = vmatpush.bf16.msra.mxu0 %v2074
    %2443 = vmatpush.bf16.msra.mxu0 %v2066
    %2444 = vmatpush.bf16.msra.mxu0 %v2058
    %2445 = vmatpush.bf16.msra.mxu0 %v2050
    %2446 = vmatpush.bf16.msra.mxu0 %v2042
    %2447 = vmatpush.bf16.msra.mxu0 %v2034
    %2448 = vmatmul.bf16.gmra.mxu0 %v1625
    %v2449 = vpop.f32.mrf.mxu0
    %v2450 = vadd.f32 %v1634, %v2449
    %v2451 = vpop.f32.mrf.mxu0
    %2452 = vdwg.mxu0
    %2453 = vmatpush.bf16.msra.mxu0 %v2154
    %2454 = vmatpush.bf16.msra.mxu0 %v2146
    %2455 = vmatpush.bf16.msra.mxu0 %v2138
    %2456 = vmatpush.bf16.msra.mxu0 %v2130
    %2457 = vmatpush.bf16.msra.mxu0 %v2122
    %2458 = vmatpush.bf16.msra.mxu0 %v2114
    %2459 = vmatpush.bf16.msra.mxu0 %v2106
    %2460 = vmatpush.bf16.msra.mxu0 %v2098
    %2461 = vmatmul.bf16.gmra.mxu0 %v1626
    %v2462 = vpop.f32.mrf.mxu0
    %v2463 = vadd.f32 %v2450, %v2462
    %v2464 = vpop.f32.mrf.mxu0
    %2465 = vdwg.mxu0
    %2466 = vmatpush.bf16.msra.mxu0 %v2091
    %2467 = vmatpush.bf16.msra.mxu0 %v2083
    %2468 = vmatpush.bf16.msra.mxu0 %v2075
    %2469 = vmatpush.bf16.msra.mxu0 %v2067
    %2470 = vmatpush.bf16.msra.mxu0 %v2059
    %2471 = vmatpush.bf16.msra.mxu0 %v2051
    %2472 = vmatpush.bf16.msra.mxu0 %v2043
    %2473 = vmatpush.bf16.msra.mxu0 %v2035
    %2474 = vmatmul.bf16.gmra.mxu0 %v1625
    %v2475 = vpop.f32.mrf.mxu0
    %v2476 = vadd.f32 %v1635, %v2475
    %v2477 = vpop.f32.mrf.mxu0
    %2478 = vdwg.mxu0
    %2479 = vmatpush.bf16.msra.mxu0 %v2155
    %2480 = vmatpush.bf16.msra.mxu0 %v2147
    %2481 = vmatpush.bf16.msra.mxu0 %v2139
    %2482 = vmatpush.bf16.msra.mxu0 %v2131
    %2483 = vmatpush.bf16.msra.mxu0 %v2123
    %2484 = vmatpush.bf16.msra.mxu0 %v2115
    %2485 = vmatpush.bf16.msra.mxu0 %v2107
    %2486 = vmatpush.bf16.msra.mxu0 %v2099
    %2487 = vmatmul.bf16.gmra.mxu0 %v1626
    %v2488 = vpop.f32.mrf.mxu0
    %v2489 = vadd.f32 %v2476, %v2488
    %v2490 = vpop.f32.mrf.mxu0
    %2491 = vdwg.mxu0
    %2492 = vst [vmem:[#allocation7] sm:$0xff] %v2307
    %2493 = vst [vmem:[#allocation7 + $0x8] sm:$0xff] %v2333
    %2494 = vst [vmem:[#allocation7 + $0x10] sm:$0xff] %v2359
    %2495 = vst [vmem:[#allocation7 + $0x18] sm:$0xff] %v2385
    %2496 = vst [vmem:[#allocation7 + $0x20] sm:$0xff] %v2411
    %2497 = vst [vmem:[#allocation7 + $0x28] sm:$0xff] %v2437
    %2498 = vst [vmem:[#allocation7 + $0x30] sm:$0xff] %v2463
    %2499 = vst [vmem:[#allocation7 + $0x38] sm:$0xff] %v2489
    // Predicated region
    $region78: #{tpu_custom_call.1} parent=1 // pred_check
      _
    $region79: #{tpu_custom_call.1} parent=1 // pred_check_branch
      %2501 = sbr.rel (0) target = $region81
    $region80: #{tpu_custom_call.1} parent=1 // pred_region
      %2503 = vsyncadd [#allocation4], 0
      %s2505 = sshll.u32 [#allocation7], 4
      %s2506 = int_to_ptr.vmem [resolvable:$true] %s2505
      %s2507 = sshll.u32 %s17, 4
      %s2508 = int_to_ptr.hbm [resolvable:$true] %s2507
      %2510 = dma.vmem_to_hbm [thread:$0]  %s2506, 1024, %s2508, [#allocation4]
    $region81: #{tpu_custom_call.1} parent=1 // pred_fallthru
      _
    // Predicated region
    $region82: #{tpu_custom_call.1} parent=1 // pred_check
      _
    $region83: #{tpu_custom_call.1} parent=1 // pred_check_branch
      %2512 = sbr.rel (0) target = $region85
    $region84: #{tpu_custom_call.1} parent=1 // pred_region
      %2514 = dma.done [#allocation4], 1024
    $region85: #{tpu_custom_call.1} parent=1 // pred_fallthru
      _
    %2515 = vsyncpa [#allocation3], 1
    %2516 = vsyncpa [#allocation6], 1
    %2517 = vsyncpa [#allocation4], 1

</llo_original>
